<compile_context>
chip_gen: v7x
topology: tpu7x:2x2x1
jax: 0.10.0
libtpu: 0.0.40
codegen_flags: <defaults>
</compile_context>

<pallas_src>
import math
import jax
import jax.numpy as jnp
from jax.experimental import pallas as pl
from jax.experimental.pallas import tpu as pltpu

# ---- config (small, deterministic) ----
B = 2                 # batch
T = 8                 # nn_max_tok_seq (full causal window)
E = 32                # nn_embed
H = 4                 # nn_head
MLP_EXP = 4           # nn_mlp_expansion
D = E // H            # head dim
R = B * T             # rows after folding batch into sequence
F = MLP_EXP * E       # MLP hidden width (128)
LN_EPS = 1e-5


def _norm(v):
    """LayerNorm without affine (gamma/beta are folded into the next matmul)."""
    mu = jnp.mean(v, axis=-1, keepdims=True)
    c = v - mu
    var = jnp.mean(c * c, axis=-1, keepdims=True)
    return c * jax.lax.rsqrt(var + LN_EPS)


def _gelu_tanh(x):
    # GELU(approximate='tanh')
    c = math.sqrt(2.0 / math.pi)
    return 0.5 * x * (1.0 + jnp.tanh(c * (x + 0.044715 * x * x * x)))


def block_kernel(x_ref, wqkv_ref, wproj_ref, wfc_ref, wproj2_ref,
                 bias_ref, mask_ref, o_ref):
    x = x_ref[...]                                    # (R, E) f32

    # bias slab: row0 = b_qkv (96), row1 = b_fc (128), row2 = b_proj, row3 = b_proj2
    b_qkv = bias_ref[0:1, :3 * E]
    b_fc = bias_ref[1:2, :]
    b_proj = bias_ref[2:3, :E]
    b_proj2 = bias_ref[3:4, :E]

    # ---- ln_1 (affine folded) + fused QKV projection ----
    h = _norm(x)
    qkv = jnp.dot(h, wqkv_ref[...], preferred_element_type=jnp.float32) + b_qkv  # (R, 3E)

    mask = mask_ref[...]                              # (R, R) additive: 0 / -1e30

    heads = []
    for hh in range(H):                               # static unroll, H = 4
        q = qkv[:, hh * D:(hh + 1) * D]               # (R, D); 1/sqrt(D) pre-folded
        k = qkv[:, E + hh * D:E + (hh + 1) * D]       # (R, D)
        v = qkv[:, 2 * E + hh * D:2 * E + (hh + 1) * D]
        # q @ k^T as a single (R, R) matmul; batch handled by block-diag mask
        att = jax.lax.dot_general(q, k, (((1,), (1,)), ((), ())),
                                  preferred_element_type=jnp.float32)  # (R, R)
        att = att + mask
        att = att - jnp.max(att, axis=-1, keepdims=True)
        p = jnp.exp(att)
        p = p / jnp.sum(p, axis=-1, keepdims=True)    # exact division (tolerance-safe)
        heads.append(jnp.dot(p, v, preferred_element_type=jnp.float32))  # (R, D)

    y = jnp.concatenate(heads, axis=-1)               # (R, E): head concat in lanes
    x = x + jnp.dot(y, wproj_ref[...], preferred_element_type=jnp.float32) + b_proj

    # ---- ln_2 (affine folded) + MLP ----
    h2 = _norm(x)
    f = jnp.dot(h2, wfc_ref[...], preferred_element_type=jnp.float32) + b_fc
    f = _gelu_tanh(f)
    o_ref[...] = x + jnp.dot(f, wproj2_ref[...], preferred_element_type=jnp.float32) + b_proj2


def init_params(key):
    ks = jax.random.split(key, 4)
    std = 0.02
    return {
        "ln1_g": jnp.ones((1, E), jnp.float32),
        "ln1_b": jnp.zeros((1, E), jnp.float32),
        "w_qkv": std * jax.random.normal(ks[0], (E, 3 * E), jnp.float32),
        "b_qkv": jnp.zeros((1, 3 * E), jnp.float32),
        "w_proj": std * jax.random.normal(ks[1], (E, E), jnp.float32),
        "b_proj": jnp.zeros((1, E), jnp.float32),
        "ln2_g": jnp.ones((1, E), jnp.float32),
        "ln2_b": jnp.zeros((1, E), jnp.float32),
        "w_fc": std * jax.random.normal(ks[2], (E, MLP_EXP * E), jnp.float32),
        "b_fc": jnp.zeros((1, MLP_EXP * E), jnp.float32),
        "w_proj2": std * jax.random.normal(ks[3], (MLP_EXP * E, E), jnp.float32),
        "b_proj2": jnp.zeros((1, E), jnp.float32),
    }


def pack_params(p):
    """One-time (load-time) packing of canonical params into the kernel layout.

    Folds LN1 gamma/beta + 1/sqrt(D) into w_qkv/b_qkv, LN2 gamma/beta into
    w_fc/b_fc, packs all bias vectors into a single lane-dense (4,128) slab,
    and precomputes the additive block-diagonal causal mask.
    """
    scale = 1.0 / math.sqrt(D)
    qkv_scale = jnp.concatenate(
        [jnp.full((1, E), scale, jnp.float32), jnp.ones((1, 2 * E), jnp.float32)], axis=1)

    w_qkv_f = (p["ln1_g"].reshape(E, 1) * p["w_qkv"]) * qkv_scale            # (E, 3E)
    b_qkv_f = (p["ln1_b"] @ p["w_qkv"] + p["b_qkv"]) * qkv_scale             # (1, 3E)
    w_fc_f = p["ln2_g"].reshape(E, 1) * p["w_fc"]                            # (E, F)
    b_fc_f = p["ln2_b"] @ p["w_fc"] + p["b_fc"]                              # (1, F)

    def pad_lanes(v, n=128):
        return jnp.pad(v, ((0, 0), (0, n - v.shape[1])))

    bias_slab = jnp.concatenate(
        [pad_lanes(b_qkv_f), pad_lanes(b_fc_f),
         pad_lanes(p["b_proj"]), pad_lanes(p["b_proj2"])], axis=0)           # (4, 128)

    # additive mask: 0 where (same batch block) & causal, -1e30 elsewhere
    r = jnp.arange(R)
    same_batch = (r[:, None] // T) == (r[None, :] // T)
    causal = (r[None, :] % T) <= (r[:, None] % T)
    mask_bias = jnp.where(same_batch & causal, 0.0, -1e30).astype(jnp.float32)  # (R, R)

    return {
        "w_qkv": w_qkv_f,
        "w_proj": p["w_proj"],
        "w_fc": w_fc_f,
        "w_proj2": p["w_proj2"],
        "bias": bias_slab,
        "mask": mask_bias,
    }


def block_forward(x, packed):
    x2 = x.reshape(R, E)                              # wrapper-side layout plumbing
    inputs = [x2, packed["w_qkv"], packed["w_proj"], packed["w_fc"],
              packed["w_proj2"], packed["bias"], packed["mask"]]

    vmem_spec = pl.BlockSpec(memory_space=pltpu.MemorySpace.VMEM)
    out = pl.pallas_call(
        block_kernel,
        out_shape=jax.ShapeDtypeStruct((R, E), jnp.float32),
        in_specs=[vmem_spec] * len(inputs),
        out_specs=vmem_spec,
    )(*inputs)
    return out.reshape(B, T, E)


def block_forward_ref(x, p):
    """Pure-JAX reference matching the PyTorch semantics."""
    def ln(v, g, b):
        mu = v.mean(-1, keepdims=True)
        var = ((v - mu) ** 2).mean(-1, keepdims=True)
        return (v - mu) / jnp.sqrt(var + LN_EPS) * g + b

    h = ln(x, p["ln1_g"], p["ln1_b"])
    qkv = h @ p["w_qkv"] + p["b_qkv"]
    q, k, v = jnp.split(qkv, 3, axis=-1)
    q = q.reshape(B, T, H, D).transpose(0, 2, 1, 3)
    k = k.reshape(B, T, H, D).transpose(0, 2, 1, 3)
    v = v.reshape(B, T, H, D).transpose(0, 2, 1, 3)
    att = jnp.einsum("bhtd,bhsd->bhts", q, k) / math.sqrt(D)
    mask = jnp.tril(jnp.ones((T, T), bool))
    att = jnp.where(mask, att, -jnp.inf)
    att = jax.nn.softmax(att, axis=-1)
    y = jnp.einsum("bhts,bhsd->bhtd", att, v)
    y = y.transpose(0, 2, 1, 3).reshape(B, T, E)
    y = y @ p["w_proj"] + p["b_proj"]
    x = x + y
    h2 = ln(x, p["ln2_g"], p["ln2_b"])
    f = h2 @ p["w_fc"] + p["b_fc"]
    f = jax.nn.gelu(f, approximate=True)
    f = f @ p["w_proj2"] + p["b_proj2"]
    return x + f


if __name__ == "__main__":
    key = jax.random.PRNGKey(0)
    kx, kp = jax.random.split(key)
    x = jax.random.normal(kx, (B, T, E), jnp.float32)
    params = init_params(kp)

    packed = pack_params(params)              # one-time packing, off the hot path
    packed = jax.tree_util.tree_map(jax.block_until_ready, packed)

    out = block_forward(x, packed)
    out = jax.block_until_ready(out)

    ref = block_forward_ref(x, params)
    assert out.shape == (B, T, E)
    assert jnp.allclose(out, ref, atol=2e-4, rtol=2e-4), "mismatch vs reference"

    print("KERNEL_OK")
</pallas_src>

<mosaic_0001>
module attributes {stable_mosaic.version = 11 : i64} {
  func.func @block_kernel(%arg0: memref<16x32xf32, #tpu.memory_space<vmem>>, %arg1: memref<32x96xf32, #tpu.memory_space<vmem>>, %arg2: memref<32x32xf32, #tpu.memory_space<vmem>>, %arg3: memref<32x128xf32, #tpu.memory_space<vmem>>, %arg4: memref<128x32xf32, #tpu.memory_space<vmem>>, %arg5: memref<4x128xf32, #tpu.memory_space<vmem>>, %arg6: memref<16x16xf32, #tpu.memory_space<vmem>>, %arg7: memref<16x32xf32, #tpu.memory_space<vmem>>) attributes {dimension_semantics = [], scalar_prefetch = 0 : i64, scratch_operands = 0 : i64, tpu.core_type = #tpu.core_type<tc>} {
    %c0 = arith.constant 0 : index
    %c0_0 = arith.constant 0 : index
    %0 = vector.load %arg0[%c0, %c0_0] : memref<16x32xf32, #tpu.memory_space<vmem>>, vector<16x32xf32>
    %c0_1 = arith.constant 0 : index
    %c0_2 = arith.constant 0 : index
    %1 = vector.load %arg5[%c0_1, %c0_2] : memref<4x128xf32, #tpu.memory_space<vmem>>, vector<1x96xf32>
    %c1 = arith.constant 1 : index
    %c0_3 = arith.constant 0 : index
    %2 = vector.load %arg5[%c1, %c0_3] : memref<4x128xf32, #tpu.memory_space<vmem>>, vector<1x128xf32>
    %c2 = arith.constant 2 : index
    %c0_4 = arith.constant 0 : index
    %3 = vector.load %arg5[%c2, %c0_4] : memref<4x128xf32, #tpu.memory_space<vmem>>, vector<1x32xf32>
    %c3 = arith.constant 3 : index
    %c0_5 = arith.constant 0 : index
    %4 = vector.load %arg5[%c3, %c0_5] : memref<4x128xf32, #tpu.memory_space<vmem>>, vector<1x32xf32>
    %cst = arith.constant dense<0.000000e+00> : vector<16xf32>
    %5 = vector.multi_reduction <add>, %0, %cst [1] : vector<16x32xf32> to vector<16xf32>
    %6 = vector.shape_cast %5 : vector<16xf32> to vector<16x1xf32>
    %cst_6 = arith.constant 3.200000e+01 : f32
    %7 = vector.broadcast %cst_6 : f32 to vector<16x1xf32>
    %8 = arith.divf %6, %7 : vector<16x1xf32>
    %9 = vector.broadcast %8 : vector<16x1xf32> to vector<16x32xf32>
    %10 = arith.subf %0, %9 : vector<16x32xf32>
    %11 = arith.mulf %10, %10 : vector<16x32xf32>
    %cst_7 = arith.constant dense<0.000000e+00> : vector<16xf32>
    %12 = vector.multi_reduction <add>, %11, %cst_7 [1] : vector<16x32xf32> to vector<16xf32>
    %13 = vector.shape_cast %12 : vector<16xf32> to vector<16x1xf32>
    %cst_8 = arith.constant 3.200000e+01 : f32
    %14 = vector.broadcast %cst_8 : f32 to vector<16x1xf32>
    %15 = arith.divf %13, %14 : vector<16x1xf32>
    %cst_9 = arith.constant 9.99999974E-6 : f32
    %16 = vector.broadcast %cst_9 : f32 to vector<16x1xf32>
    %17 = arith.addf %15, %16 : vector<16x1xf32>
    %18 = math.rsqrt %17 : vector<16x1xf32>
    %19 = vector.broadcast %18 : vector<16x1xf32> to vector<16x32xf32>
    %20 = arith.mulf %10, %19 : vector<16x32xf32>
    %c0_10 = arith.constant 0 : index
    %c0_11 = arith.constant 0 : index
    %21 = vector.load %arg1[%c0_10, %c0_11] : memref<32x96xf32, #tpu.memory_space<vmem>>, vector<32x96xf32>
    %cst_12 = arith.constant dense<0.000000e+00> : vector<16x96xf32>
    %22 = tpu.matmul %20, %21, %cst_12 {dimension_numbers = #tpu.dot_dimension_numbers<[1], [0], [0], [1], [0, 0, 1, 1], [], []>} : vector<16x32xf32>, vector<32x96xf32>, vector<16x96xf32> -> vector<16x96xf32>
    %23 = vector.broadcast %1 : vector<1x96xf32> to vector<16x96xf32>
    %24 = arith.addf %22, %23 : vector<16x96xf32>
    %c0_13 = arith.constant 0 : index
    %c0_14 = arith.constant 0 : index
    %25 = vector.load %arg6[%c0_13, %c0_14] : memref<16x16xf32, #tpu.memory_space<vmem>>, vector<16x16xf32>
    %26 = vector.extract_strided_slice %24 {offsets = [0, 0], sizes = [16, 8], strides = [1, 1]} : vector<16x96xf32> to vector<16x8xf32>
    %27 = vector.extract_strided_slice %24 {offsets = [0, 32], sizes = [16, 8], strides = [1, 1]} : vector<16x96xf32> to vector<16x8xf32>
    %28 = vector.extract_strided_slice %24 {offsets = [0, 64], sizes = [16, 8], strides = [1, 1]} : vector<16x96xf32> to vector<16x8xf32>
    %cst_15 = arith.constant dense<0.000000e+00> : vector<16x16xf32>
    %29 = tpu.matmul %26, %27, %cst_15 {dimension_numbers = #tpu.dot_dimension_numbers<[1], [1], [0], [0], [0, 0, 1, 0], [], []>} : vector<16x8xf32>, vector<16x8xf32>, vector<16x16xf32> -> vector<16x16xf32>
    %30 = arith.addf %29, %25 : vector<16x16xf32>
    %cst_16 = arith.constant dense<0xFF800000> : vector<16xf32>
    %31 = vector.multi_reduction <maximumf>, %30, %cst_16 [1] : vector<16x16xf32> to vector<16xf32>
    %32 = vector.shape_cast %31 : vector<16xf32> to vector<16x1xf32>
    %33 = vector.broadcast %32 : vector<16x1xf32> to vector<16x16xf32>
    %34 = arith.subf %30, %33 : vector<16x16xf32>
    %35 = math.exp %34 : vector<16x16xf32>
    %cst_17 = arith.constant dense<0.000000e+00> : vector<16xf32>
    %36 = vector.multi_reduction <add>, %35, %cst_17 [1] : vector<16x16xf32> to vector<16xf32>
    %37 = vector.shape_cast %36 : vector<16xf32> to vector<16x1xf32>
    %38 = vector.broadcast %37 : vector<16x1xf32> to vector<16x16xf32>
    %39 = arith.divf %35, %38 : vector<16x16xf32>
    %cst_18 = arith.constant dense<0.000000e+00> : vector<16x8xf32>
    %40 = tpu.matmul %39, %28, %cst_18 {dimension_numbers = #tpu.dot_dimension_numbers<[1], [0], [0], [1], [0, 0, 1, 1], [], []>} : vector<16x16xf32>, vector<16x8xf32>, vector<16x8xf32> -> vector<16x8xf32>
    %41 = vector.extract_strided_slice %24 {offsets = [0, 8], sizes = [16, 8], strides = [1, 1]} : vector<16x96xf32> to vector<16x8xf32>
    %42 = vector.extract_strided_slice %24 {offsets = [0, 40], sizes = [16, 8], strides = [1, 1]} : vector<16x96xf32> to vector<16x8xf32>
    %43 = vector.extract_strided_slice %24 {offsets = [0, 72], sizes = [16, 8], strides = [1, 1]} : vector<16x96xf32> to vector<16x8xf32>
    %cst_19 = arith.constant dense<0.000000e+00> : vector<16x16xf32>
    %44 = tpu.matmul %41, %42, %cst_19 {dimension_numbers = #tpu.dot_dimension_numbers<[1], [1], [0], [0], [0, 0, 1, 0], [], []>} : vector<16x8xf32>, vector<16x8xf32>, vector<16x16xf32> -> vector<16x16xf32>
    %45 = arith.addf %44, %25 : vector<16x16xf32>
    %cst_20 = arith.constant dense<0xFF800000> : vector<16xf32>
    %46 = vector.multi_reduction <maximumf>, %45, %cst_20 [1] : vector<16x16xf32> to vector<16xf32>
    %47 = vector.shape_cast %46 : vector<16xf32> to vector<16x1xf32>
    %48 = vector.broadcast %47 : vector<16x1xf32> to vector<16x16xf32>
    %49 = arith.subf %45, %48 : vector<16x16xf32>
    %50 = math.exp %49 : vector<16x16xf32>
    %cst_21 = arith.constant dense<0.000000e+00> : vector<16xf32>
    %51 = vector.multi_reduction <add>, %50, %cst_21 [1] : vector<16x16xf32> to vector<16xf32>
    %52 = vector.shape_cast %51 : vector<16xf32> to vector<16x1xf32>
    %53 = vector.broadcast %52 : vector<16x1xf32> to vector<16x16xf32>
    %54 = arith.divf %50, %53 : vector<16x16xf32>
    %cst_22 = arith.constant dense<0.000000e+00> : vector<16x8xf32>
    %55 = tpu.matmul %54, %43, %cst_22 {dimension_numbers = #tpu.dot_dimension_numbers<[1], [0], [0], [1], [0, 0, 1, 1], [], []>} : vector<16x16xf32>, vector<16x8xf32>, vector<16x8xf32> -> vector<16x8xf32>
    %56 = vector.extract_strided_slice %24 {offsets = [0, 16], sizes = [16, 8], strides = [1, 1]} : vector<16x96xf32> to vector<16x8xf32>
    %57 = vector.extract_strided_slice %24 {offsets = [0, 48], sizes = [16, 8], strides = [1, 1]} : vector<16x96xf32> to vector<16x8xf32>
    %58 = vector.extract_strided_slice %24 {offsets = [0, 80], sizes = [16, 8], strides = [1, 1]} : vector<16x96xf32> to vector<16x8xf32>
    %cst_23 = arith.constant dense<0.000000e+00> : vector<16x16xf32>
    %59 = tpu.matmul %56, %57, %cst_23 {dimension_numbers = #tpu.dot_dimension_numbers<[1], [1], [0], [0], [0, 0, 1, 0], [], []>} : vector<16x8xf32>, vector<16x8xf32>, vector<16x16xf32> -> vector<16x16xf32>
    %60 = arith.addf %59, %25 : vector<16x16xf32>
    %cst_24 = arith.constant dense<0xFF800000> : vector<16xf32>
    %61 = vector.multi_reduction <maximumf>, %60, %cst_24 [1] : vector<16x16xf32> to vector<16xf32>
    %62 = vector.shape_cast %61 : vector<16xf32> to vector<16x1xf32>
    %63 = vector.broadcast %62 : vector<16x1xf32> to vector<16x16xf32>
    %64 = arith.subf %60, %63 : vector<16x16xf32>
    %65 = math.exp %64 : vector<16x16xf32>
    %cst_25 = arith.constant dense<0.000000e+00> : vector<16xf32>
    %66 = vector.multi_reduction <add>, %65, %cst_25 [1] : vector<16x16xf32> to vector<16xf32>
    %67 = vector.shape_cast %66 : vector<16xf32> to vector<16x1xf32>
    %68 = vector.broadcast %67 : vector<16x1xf32> to vector<16x16xf32>
    %69 = arith.divf %65, %68 : vector<16x16xf32>
    %cst_26 = arith.constant dense<0.000000e+00> : vector<16x8xf32>
    %70 = tpu.matmul %69, %58, %cst_26 {dimension_numbers = #tpu.dot_dimension_numbers<[1], [0], [0], [1], [0, 0, 1, 1], [], []>} : vector<16x16xf32>, vector<16x8xf32>, vector<16x8xf32> -> vector<16x8xf32>
    %71 = vector.extract_strided_slice %24 {offsets = [0, 24], sizes = [16, 8], strides = [1, 1]} : vector<16x96xf32> to vector<16x8xf32>
    %72 = vector.extract_strided_slice %24 {offsets = [0, 56], sizes = [16, 8], strides = [1, 1]} : vector<16x96xf32> to vector<16x8xf32>
    %73 = vector.extract_strided_slice %24 {offsets = [0, 88], sizes = [16, 8], strides = [1, 1]} : vector<16x96xf32> to vector<16x8xf32>
    %cst_27 = arith.constant dense<0.000000e+00> : vector<16x16xf32>
    %74 = tpu.matmul %71, %72, %cst_27 {dimension_numbers = #tpu.dot_dimension_numbers<[1], [1], [0], [0], [0, 0, 1, 0], [], []>} : vector<16x8xf32>, vector<16x8xf32>, vector<16x16xf32> -> vector<16x16xf32>
    %75 = arith.addf %74, %25 : vector<16x16xf32>
    %cst_28 = arith.constant dense<0xFF800000> : vector<16xf32>
    %76 = vector.multi_reduction <maximumf>, %75, %cst_28 [1] : vector<16x16xf32> to vector<16xf32>
    %77 = vector.shape_cast %76 : vector<16xf32> to vector<16x1xf32>
    %78 = vector.broadcast %77 : vector<16x1xf32> to vector<16x16xf32>
    %79 = arith.subf %75, %78 : vector<16x16xf32>
    %80 = math.exp %79 : vector<16x16xf32>
    %cst_29 = arith.constant dense<0.000000e+00> : vector<16xf32>
    %81 = vector.multi_reduction <add>, %80, %cst_29 [1] : vector<16x16xf32> to vector<16xf32>
    %82 = vector.shape_cast %81 : vector<16xf32> to vector<16x1xf32>
    %83 = vector.broadcast %82 : vector<16x1xf32> to vector<16x16xf32>
    %84 = arith.divf %80, %83 : vector<16x16xf32>
    %cst_30 = arith.constant dense<0.000000e+00> : vector<16x8xf32>
    %85 = tpu.matmul %84, %73, %cst_30 {dimension_numbers = #tpu.dot_dimension_numbers<[1], [0], [0], [1], [0, 0, 1, 1], [], []>} : vector<16x16xf32>, vector<16x8xf32>, vector<16x8xf32> -> vector<16x8xf32>
    %86 = tpu.concatenate %40, %55, %70, %85 in 1 : vector<16x8xf32>, vector<16x8xf32>, vector<16x8xf32>, vector<16x8xf32> -> vector<16x32xf32>
    %c0_31 = arith.constant 0 : index
    %c0_32 = arith.constant 0 : index
    %87 = vector.load %arg2[%c0_31, %c0_32] : memref<32x32xf32, #tpu.memory_space<vmem>>, vector<32x32xf32>
    %cst_33 = arith.constant dense<0.000000e+00> : vector<16x32xf32>
    %88 = tpu.matmul %86, %87, %cst_33 {dimension_numbers = #tpu.dot_dimension_numbers<[1], [0], [0], [1], [0, 0, 1, 1], [], []>} : vector<16x32xf32>, vector<32x32xf32>, vector<16x32xf32> -> vector<16x32xf32>
    %89 = arith.addf %0, %88 : vector<16x32xf32>
    %90 = vector.broadcast %3 : vector<1x32xf32> to vector<16x32xf32>
    %91 = arith.addf %89, %90 : vector<16x32xf32>
    %cst_34 = arith.constant dense<0.000000e+00> : vector<16xf32>
    %92 = vector.multi_reduction <add>, %91, %cst_34 [1] : vector<16x32xf32> to vector<16xf32>
    %93 = vector.shape_cast %92 : vector<16xf32> to vector<16x1xf32>
    %cst_35 = arith.constant 3.200000e+01 : f32
    %94 = vector.broadcast %cst_35 : f32 to vector<16x1xf32>
    %95 = arith.divf %93, %94 : vector<16x1xf32>
    %96 = vector.broadcast %95 : vector<16x1xf32> to vector<16x32xf32>
    %97 = arith.subf %91, %96 : vector<16x32xf32>
    %98 = arith.mulf %97, %97 : vector<16x32xf32>
    %cst_36 = arith.constant dense<0.000000e+00> : vector<16xf32>
    %99 = vector.multi_reduction <add>, %98, %cst_36 [1] : vector<16x32xf32> to vector<16xf32>
    %100 = vector.shape_cast %99 : vector<16xf32> to vector<16x1xf32>
    %cst_37 = arith.constant 3.200000e+01 : f32
    %101 = vector.broadcast %cst_37 : f32 to vector<16x1xf32>
    %102 = arith.divf %100, %101 : vector<16x1xf32>
    %cst_38 = arith.constant 9.99999974E-6 : f32
    %103 = vector.broadcast %cst_38 : f32 to vector<16x1xf32>
    %104 = arith.addf %102, %103 : vector<16x1xf32>
    %105 = math.rsqrt %104 : vector<16x1xf32>
    %106 = vector.broadcast %105 : vector<16x1xf32> to vector<16x32xf32>
    %107 = arith.mulf %97, %106 : vector<16x32xf32>
    %c0_39 = arith.constant 0 : index
    %c0_40 = arith.constant 0 : index
    %108 = vector.load %arg3[%c0_39, %c0_40] : memref<32x128xf32, #tpu.memory_space<vmem>>, vector<32x128xf32>
    %cst_41 = arith.constant dense<0.000000e+00> : vector<16x128xf32>
    %109 = tpu.matmul %107, %108, %cst_41 {dimension_numbers = #tpu.dot_dimension_numbers<[1], [0], [0], [1], [0, 0, 1, 1], [], []>} : vector<16x32xf32>, vector<32x128xf32>, vector<16x128xf32> -> vector<16x128xf32>
    %110 = vector.broadcast %2 : vector<1x128xf32> to vector<16x128xf32>
    %111 = arith.addf %109, %110 : vector<16x128xf32>
    %cst_42 = arith.constant 5.000000e-01 : f32
    %112 = vector.broadcast %cst_42 : f32 to vector<16x128xf32>
    %113 = arith.mulf %112, %111 : vector<16x128xf32>
    %cst_43 = arith.constant 4.471500e-02 : f32
    %114 = vector.broadcast %cst_43 : f32 to vector<16x128xf32>
    %115 = arith.mulf %114, %111 : vector<16x128xf32>
    %116 = arith.mulf %115, %111 : vector<16x128xf32>
    %117 = arith.mulf %116, %111 : vector<16x128xf32>
    %118 = arith.addf %111, %117 : vector<16x128xf32>
    %cst_44 = arith.constant 0.797884583 : f32
    %119 = vector.broadcast %cst_44 : f32 to vector<16x128xf32>
    %120 = arith.mulf %119, %118 : vector<16x128xf32>
    %121 = math.tanh %120 : vector<16x128xf32>
    %cst_45 = arith.constant 1.000000e+00 : f32
    %122 = vector.broadcast %cst_45 : f32 to vector<16x128xf32>
    %123 = arith.addf %122, %121 : vector<16x128xf32>
    %124 = arith.mulf %113, %123 : vector<16x128xf32>
    %c0_46 = arith.constant 0 : index
    %c0_47 = arith.constant 0 : index
    %125 = vector.load %arg4[%c0_46, %c0_47] : memref<128x32xf32, #tpu.memory_space<vmem>>, vector<128x32xf32>
    %cst_48 = arith.constant dense<0.000000e+00> : vector<16x32xf32>
    %126 = tpu.matmul %124, %125, %cst_48 {dimension_numbers = #tpu.dot_dimension_numbers<[1], [0], [0], [1], [0, 0, 1, 1], [], []>} : vector<16x128xf32>, vector<128x32xf32>, vector<16x32xf32> -> vector<16x32xf32>
    %127 = arith.addf %91, %126 : vector<16x32xf32>
    %128 = vector.broadcast %4 : vector<1x32xf32> to vector<16x32xf32>
    %129 = arith.addf %127, %128 : vector<16x32xf32>
    %c0_49 = arith.constant 0 : index
    %c0_50 = arith.constant 0 : index
    %130 = vector.load %arg7[%c0_49, %c0_50] : memref<16x32xf32, #tpu.memory_space<vmem>>, vector<16x32xf32>
    tpu.vector_store %arg7[%c0_49, %c0_50], %129 {strides = array<i32>} : memref<16x32xf32, #tpu.memory_space<vmem>>, vector<16x32xf32>,
    return
  }
}

</mosaic_0001>

<llo_original>
// kernel: tpu_custom_call.1
$region0: #{tpu_custom_call.1}
  #allocation0 [shape = 'u32[]', space=smem, size = 0x4, offset = 0x4, fixed_abs, tag = 'smem constant byte address 0x4 - core index']
  #allocation1 [shape = 'u32[144,128]{1,0:T(1,128)}', space=vmem, size = 0x12000, scoped, tag = 'internal scratch']
  %s0 = inlined_call_operand.vmem [shape: f32[16,32], index: 0, kind: input, shape index: {}]
  %s1 = inlined_call_operand.vmem [shape: f32[32,96], index: 1, kind: input, shape index: {}]
  %s2 = inlined_call_operand.vmem [shape: f32[32,32], index: 2, kind: input, shape index: {}]
  %s3 = inlined_call_operand.vmem [shape: f32[32,128], index: 3, kind: input, shape index: {}]
  %s4 = inlined_call_operand.vmem [shape: f32[128,32], index: 4, kind: input, shape index: {}]
  %s5 = inlined_call_operand.vmem [shape: f32[4,128], index: 5, kind: input, shape index: {}]
  %s6 = inlined_call_operand.vmem [shape: f32[16,16], index: 6, kind: input, shape index: {}]
  %s7 = inlined_call_operand.hbm [shape: f32[16,32], index: 7, kind: output, shape index: {}]
  %s8 = sld [smem:[#allocation0]]
  $region38: #{tpu_custom_call.1} parent=0
    _
  %s10 = ssub.s32 1, %s8
  %s11 = scalar_select 0, %s10, %s8
  $region1: #{tpu_custom_call.1} parent=0
    #allocation2 [shape = 'u8[8192]{0}', space=vmem, size = 0x2000, scoped, tag = 'output window, operand 0, single buffered']
    #allocation3 [shape = 's32[1]{0}', space=sflag, size = 0x4, scoped, tag = 'scoped memory for tpu_custom_call.1']
    %12 = vsyncpa [#allocation3], 0
    // Predicated region
    $region2: #{tpu_custom_call.1} parent=1 // pred_check
      _
    $region3: #{tpu_custom_call.1} parent=1 // pred_check_branch
      %14 = sbr.rel (0) target = $region5
    $region4: #{tpu_custom_call.1} parent=1 // pred_region
      _
    $region5: #{tpu_custom_call.1} parent=1 // pred_fallthru
      _
    // Predicated region
    $region6: #{tpu_custom_call.1} parent=1 // pred_check
      _
    $region7: #{tpu_custom_call.1} parent=1 // pred_check_branch
      %16 = sbr.rel (0) target = $region9
    $region8: #{tpu_custom_call.1} parent=1 // pred_region
      _
    $region9: #{tpu_custom_call.1} parent=1 // pred_fallthru
      _
    // Predicated region
    $region10: #{tpu_custom_call.1} parent=1 // pred_check
      _
    $region11: #{tpu_custom_call.1} parent=1 // pred_check_branch
      %18 = sbr.rel (0) target = $region13
    $region12: #{tpu_custom_call.1} parent=1 // pred_region
      _
    $region13: #{tpu_custom_call.1} parent=1 // pred_fallthru
      _
    // Predicated region
    $region14: #{tpu_custom_call.1} parent=1 // pred_check
      _
    $region15: #{tpu_custom_call.1} parent=1 // pred_check_branch
      %20 = sbr.rel (0) target = $region17
    $region16: #{tpu_custom_call.1} parent=1 // pred_region
      _
    $region17: #{tpu_custom_call.1} parent=1 // pred_fallthru
      _
    // Predicated region
    $region18: #{tpu_custom_call.1} parent=1 // pred_check
      _
    $region19: #{tpu_custom_call.1} parent=1 // pred_check_branch
      %22 = sbr.rel (0) target = $region21
    $region20: #{tpu_custom_call.1} parent=1 // pred_region
      _
    $region21: #{tpu_custom_call.1} parent=1 // pred_fallthru
      _
    // Predicated region
    $region22: #{tpu_custom_call.1} parent=1 // pred_check
      _
    $region23: #{tpu_custom_call.1} parent=1 // pred_check_branch
      %24 = sbr.rel (0) target = $region25
    $region24: #{tpu_custom_call.1} parent=1 // pred_region
      _
    $region25: #{tpu_custom_call.1} parent=1 // pred_fallthru
      _
    // Predicated region
    $region26: #{tpu_custom_call.1} parent=1 // pred_check
      _
    $region27: #{tpu_custom_call.1} parent=1 // pred_check_branch
      %26 = sbr.rel (0) target = $region29
    $region28: #{tpu_custom_call.1} parent=1 // pred_region
      _
    $region29: #{tpu_custom_call.1} parent=1 // pred_fallthru
      _
    %v27 = vld [vmem:[%s0] sm:$0xff]
    %v28 = vld [vmem:[%s0 + $0x8] sm:$0xff]
    %v29 = vld [vmem:[%s5] sm:$0x1]
    %v30 = vld [vmem:[%s5 + $0x1] sm:$0x1]
    %v31 = vld [vmem:[%s5 + $0x2] sm:$0x1]
    %v32 = vld [vmem:[%s5 + $0x3] sm:$0x1]
    %vm33 = vcmask 261120
    %v34 = vsel %vm33, %v27, 0.0
    %35 = vadd.xlane.f32.xlu0 %v34
    %v36 = vpop.xlane.xlu0 %35
    %v37 = vsel %vm33, %v28, 0.0
    %38 = vadd.xlane.f32.xlu0 %v37
    %v39 = vpop.xlane.xlu0 %38
    %v40 = vrcp.pop 32.0
    %v41 = vmul.f32 %v36, %v40
    %v42 = vmul.f32 %v39, %v40
    %v43 = vsub.f32 %v27, %v41
    %v44 = vsub.f32 %v28, %v42
    %v45 = vmul.f32 %v43, %v43
    %v46 = vmul.f32 %v44, %v44
    %v47 = vsel %vm33, %v45, 0.0
    %48 = vadd.xlane.f32.xlu0 %v47
    %v49 = vpop.xlane.xlu0 %48
    %v50 = vsel %vm33, %v46, 0.0
    %51 = vadd.xlane.f32.xlu0 %v50
    %v52 = vpop.xlane.xlu0 %51
    %v53 = vmul.f32 %v49, %v40
    %v54 = vmul.f32 %v52, %v40
    %v55 = vadd.f32 %v53, 1e-05
    %v56 = vadd.f32 %v54, 1e-05
    %v57 = vrsqrt.pop %v55
    %v58 = vrsqrt.pop %v56
    %v59 = vmul.f32 %v43, %v57
    %v60 = vmul.f32 %v44, %v58
    %v61 = vld [vmem:[%s1] sm:$0xff]
    %v62 = vld [vmem:[%s1 + $0x8] sm:$0xff]
    %v63 = vld [vmem:[%s1 + $0x10] sm:$0xff]
    %v64 = vld [vmem:[%s1 + $0x18] sm:$0xff]
    %v65 = vlaneseq
    %v66 = vshrl.u32 %v65, 7
    %v67 = vsub.s32 0, %v66
    %v68 = vrot.slane %v29, %v67
    %v70 = vsel %vm33, %v59, 0
    %v73 = vsel %vm33, %v60, 0
    %75 = vmatprep.subr.mxu0 0.0
    %76 = vmatpush1.msra.mxu0 %v61
    %77 = vmatprep.subr.mxu0 0.0
    %78 = vmatpush1.msra.mxu0 %v62
    %79 = vmatprep.subr.mxu0 0.0
    %80 = vmatpush1.msra.mxu0 %v63
    %81 = vmatprep.subr.mxu0 0.0
    %82 = vmatpush1.msra.mxu0 %v64
    %83 = vmatprep.subr.mxu0 0.0
    %84 = vmatpush1.msra.mxu0 0.0
    %85 = vmatprep.subr.mxu0 0.0
    %86 = vmatpush1.msra.mxu0 0.0
    %87 = vmatprep.subr.mxu0 0.0
    %88 = vmatpush1.msra.mxu0 0.0
    %89 = vmatprep.subr.mxu0 0.0
    %90 = vmatpush1.msra.mxu0 0.0
    %91 = vmatprep.subr.mxu0 0.0
    %92 = vmatpush1.msra.mxu0 0.0
    %93 = vmatprep.subr.mxu0 0.0
    %94 = vmatpush1.msra.mxu0 0.0
    %95 = vmatprep.subr.mxu0 0.0
    %96 = vmatpush1.msra.mxu0 0.0
    %97 = vmatprep.subr.mxu0 0.0
    %98 = vmatpush1.msra.mxu0 0.0
    %99 = vmatprep.subr.mxu0 0.0
    %100 = vmatpush1.msra.mxu0 0.0
    %101 = vmatprep.subr.mxu0 0.0
    %102 = vmatpush1.msra.mxu0 0.0
    %103 = vmatprep.subr.mxu0 0.0
    %104 = vmatpush1.msra.mxu0 0.0
    %105 = vmatprep.subr.mxu0 0.0
    %106 = vmatpush1.msra.mxu0 0.0
    %107 = vmatprep.subr.mxu0 0.0
    %108 = vmatpush1.msra.mxu0 0.0
    %109 = vmatprep.subr.mxu0 0.0
    %110 = vmatpush1.msra.mxu0 0.0
    %111 = vmatprep.subr.mxu0 0.0
    %112 = vmatpush1.msra.mxu0 0.0
    %113 = vmatprep.subr.mxu0 0.0
    %114 = vmatpush1.msra.mxu0 0.0
    %115 = vmatprep.subr.mxu0 0.0
    %116 = vmatpush1.msra.mxu0 0.0
    %117 = vmatprep.subr.mxu0 0.0
    %118 = vmatpush1.msra.mxu0 0.0
    %119 = vmatprep.subr.mxu0 0.0
    %120 = vmatpush1.msra.mxu0 0.0
    %121 = vmatprep.subr.mxu0 0.0
    %122 = vmatpush1.msra.mxu0 0.0
    %123 = vmatprep.subr.mxu0 0.0
    %124 = vmatpush1.msra.mxu0 0.0
    %125 = vmatprep.subr.mxu0 0.0
    %126 = vmatpush1.msra.mxu0 0.0
    %127 = vmatprep.subr.mxu0 0.0
    %128 = vmatpush1.msra.mxu0 0.0
    %129 = vmatprep.subr.mxu0 0.0
    %130 = vmatpush1.msra.mxu0 0.0
    %131 = vmatprep.subr.mxu0 0.0
    %132 = vmatpush1.msra.mxu0 0.0
    %133 = vmatprep.subr.mxu0 0.0
    %134 = vmatpush1.msra.mxu0 0.0
    %135 = vmatprep.subr.mxu0 0.0
    %136 = vmatpush1.msra.mxu0 0.0
    %137 = vmatprep.subr.mxu0 0.0
    %138 = vmatpush1.msra.mxu0 0.0
    %139 = vmatprep.mubr.f32.mxu0 0.0
    %140 = vmatmul.mubr.f32.gmra.mrb[0].mxu0 %v70
    %v141 = vpop.f32.mrb[0].mxu0
    %v142 = vadd.f32 %v68, %v141
    %v143 = vpop.f32.mrb[0].mxu0
    %144 = vmatprep.mubr.f32.mxu0 0.0
    %145 = vmatmul.mubr.f32.gmra.mrb[0].mxu0 %v73
    %v146 = vpop.f32.mrb[0].mxu0
    %v147 = vadd.f32 %v68, %v146
    %v148 = vpop.f32.mrb[0].mxu0
    %149 = vdwg.mxu0
    %v150 = vld [vmem:[%s6] sm:$0xff]
    %v151 = vld [vmem:[%s6 + $0x8] sm:$0xff]
    %154 = vrot.lane.b32.xlu0 %v142, 96
    %v155 = vpop.permute.xlu0 %154
    %156 = vrot.lane.b32.xlu0 %v147, 96
    %v157 = vpop.permute.xlu0 %156
    %vm158 = vcmask 64512
    %v159 = vsel %vm158, %v142, 0
    %v161 = vsel %vm158, %v147, 0
    %v163 = vsel %vm158, %v155, 0
    %v165 = vsel %vm158, %v157, 0
    %167 = vmatprep.subr.mxu0 0.0
    %168 = vmatpush1.xpose.msra.mxu0 %v163
    %169 = vmatprep.subr.mxu0 0.0
    %170 = vmatpush1.xpose.msra.mxu0 %v165
    %171 = vmatprep.subr.mxu0 0.0
    %172 = vmatpush1.xpose.msra.mxu0 0.0
    %173 = vmatprep.subr.mxu0 0.0
    %174 = vmatpush1.xpose.msra.mxu0 0.0
    %175 = vmatprep.subr.mxu0 0.0
    %176 = vmatpush1.xpose.msra.mxu0 0.0
    %177 = vmatprep.subr.mxu0 0.0
    %178 = vmatpush1.xpose.msra.mxu0 0.0
    %179 = vmatprep.subr.mxu0 0.0
    %180 = vmatpush1.xpose.msra.mxu0 0.0
    %181 = vmatprep.subr.mxu0 0.0
    %182 = vmatpush1.xpose.msra.mxu0 0.0
    %183 = vmatprep.subr.mxu0 0.0
    %184 = vmatpush1.xpose.msra.mxu0 0.0
    %185 = vmatprep.subr.mxu0 0.0
    %186 = vmatpush1.xpose.msra.mxu0 0.0
    %187 = vmatprep.subr.mxu0 0.0
    %188 = vmatpush1.xpose.msra.mxu0 0.0
    %189 = vmatprep.subr.mxu0 0.0
    %190 = vmatpush1.xpose.msra.mxu0 0.0
    %191 = vmatprep.subr.mxu0 0.0
    %192 = vmatpush1.xpose.msra.mxu0 0.0
    %193 = vmatprep.subr.mxu0 0.0
    %194 = vmatpush1.xpose.msra.mxu0 0.0
    %195 = vmatprep.subr.mxu0 0.0
    %196 = vmatpush1.xpose.msra.mxu0 0.0
    %197 = vmatprep.subr.mxu0 0.0
    %198 = vmatpush1.xpose.msra.mxu0 0.0
    %199 = vmatprep.subr.mxu0 0.0
    %200 = vmatpush1.xpose.msra.mxu0 0.0
    %201 = vmatprep.subr.mxu0 0.0
    %202 = vmatpush1.xpose.msra.mxu0 0.0
    %203 = vmatprep.subr.mxu0 0.0
    %204 = vmatpush1.xpose.msra.mxu0 0.0
    %205 = vmatprep.subr.mxu0 0.0
    %206 = vmatpush1.xpose.msra.mxu0 0.0
    %207 = vmatprep.subr.mxu0 0.0
    %208 = vmatpush1.xpose.msra.mxu0 0.0
    %209 = vmatprep.subr.mxu0 0.0
    %210 = vmatpush1.xpose.msra.mxu0 0.0
    %211 = vmatprep.subr.mxu0 0.0
    %212 = vmatpush1.xpose.msra.mxu0 0.0
    %213 = vmatprep.subr.mxu0 0.0
    %214 = vmatpush1.xpose.msra.mxu0 0.0
    %215 = vmatprep.subr.mxu0 0.0
    %216 = vmatpush1.xpose.msra.mxu0 0.0
    %217 = vmatprep.subr.mxu0 0.0
    %218 = vmatpush1.xpose.msra.mxu0 0.0
    %219 = vmatprep.subr.mxu0 0.0
    %220 = vmatpush1.xpose.msra.mxu0 0.0
    %221 = vmatprep.subr.mxu0 0.0
    %222 = vmatpush1.xpose.msra.mxu0 0.0
    %223 = vmatprep.subr.mxu0 0.0
    %224 = vmatpush1.xpose.msra.mxu0 0.0
    %225 = vmatprep.subr.mxu0 0.0
    %226 = vmatpush1.xpose.msra.mxu0 0.0
    %227 = vmatprep.subr.mxu0 0.0
    %228 = vmatpush1.xpose.msra.mxu0 0.0
    %229 = vmatprep.subr.mxu0 0.0
    %230 = vmatpush1.xpose.msra.mxu0 0.0
    %231 = vmatprep.mubr.f32.mxu0 0.0
    %232 = vmatmul.mubr.f32.gmra.mrb[0].mxu0 %v159
    %v233 = vpop.f32.mrb[0].mxu0
    %v234 = vadd.f32 %v150, %v233
    %v235 = vpop.f32.mrb[0].mxu0
    %236 = vmatprep.mubr.f32.mxu0 0.0
    %237 = vmatmul.mubr.f32.gmra.mrb[0].mxu0 %v161
    %v238 = vpop.f32.mrb[0].mxu0
    %v239 = vadd.f32 %v151, %v238
    %v240 = vpop.f32.mrb[0].mxu0
    %241 = vdwg.mxu0
    %vm242 = vcmask 130048
    %v243 = vsel %vm242, %v234, -inf
    %244 = vmax.xlane.f32.xlu0 %v243
    %v245 = vpop.xlane.xlu0 %244
    %v246 = vsel %vm242, %v239, -inf
    %247 = vmax.xlane.f32.xlu0 %v246
    %v248 = vpop.xlane.xlu0 %247
    %v249 = vsub.f32 %v234, %v245
    %v250 = vsub.f32 %v239, %v248
    %v251 = vmul.f32 %v249, 1.442695
    %v252 = vpow.pop %v251
    %v253 = vmul.f32 %v250, 1.442695
    %v254 = vpow.pop %v253
    %v255 = vsel %vm242, %v252, 0.0
    %256 = vadd.xlane.f32.xlu0 %v255
    %v257 = vpop.xlane.xlu0 %256
    %v258 = vsel %vm242, %v254, 0.0
    %259 = vadd.xlane.f32.xlu0 %v258
    %v260 = vpop.xlane.xlu0 %259
    %v261 = vrcp.pop %v257
    %v262 = vmul.f32 %v252, %v261
    %v263 = vrcp.pop %v260
    %v264 = vmul.f32 %v254, %v263
    %265 = vrot.lane.b32.xlu0 %v142, 64
    %v266 = vpop.permute.xlu0 %265
    %267 = vrot.lane.b32.xlu0 %v147, 64
    %v268 = vpop.permute.xlu0 %267
    %v272 = vsel %vm242, %v262, 0
    %v275 = vsel %vm242, %v264, 0
    %277 = vmatprep.subr.mxu0 0.0
    %278 = vmatpush1.msra.mxu0 %v266
    %279 = vmatprep.subr.mxu0 0.0
    %280 = vmatpush1.msra.mxu0 %v268
    %281 = vmatprep.subr.mxu0 0.0
    %282 = vmatpush1.msra.mxu0 0.0
    %283 = vmatprep.subr.mxu0 0.0
    %284 = vmatpush1.msra.mxu0 0.0
    %285 = vmatprep.subr.mxu0 0.0
    %286 = vmatpush1.msra.mxu0 0.0
    %287 = vmatprep.subr.mxu0 0.0
    %288 = vmatpush1.msra.mxu0 0.0
    %289 = vmatprep.subr.mxu0 0.0
    %290 = vmatpush1.msra.mxu0 0.0
    %291 = vmatprep.subr.mxu0 0.0
    %292 = vmatpush1.msra.mxu0 0.0
    %293 = vmatprep.subr.mxu0 0.0
    %294 = vmatpush1.msra.mxu0 0.0
    %295 = vmatprep.subr.mxu0 0.0
    %296 = vmatpush1.msra.mxu0 0.0
    %297 = vmatprep.subr.mxu0 0.0
    %298 = vmatpush1.msra.mxu0 0.0
    %299 = vmatprep.subr.mxu0 0.0
    %300 = vmatpush1.msra.mxu0 0.0
    %301 = vmatprep.subr.mxu0 0.0
    %302 = vmatpush1.msra.mxu0 0.0
    %303 = vmatprep.subr.mxu0 0.0
    %304 = vmatpush1.msra.mxu0 0.0
    %305 = vmatprep.subr.mxu0 0.0
    %306 = vmatpush1.msra.mxu0 0.0
    %307 = vmatprep.subr.mxu0 0.0
    %308 = vmatpush1.msra.mxu0 0.0
    %309 = vmatprep.subr.mxu0 0.0
    %310 = vmatpush1.msra.mxu0 0.0
    %311 = vmatprep.subr.mxu0 0.0
    %312 = vmatpush1.msra.mxu0 0.0
    %313 = vmatprep.subr.mxu0 0.0
    %314 = vmatpush1.msra.mxu0 0.0
    %315 = vmatprep.subr.mxu0 0.0
    %316 = vmatpush1.msra.mxu0 0.0
    %317 = vmatprep.subr.mxu0 0.0
    %318 = vmatpush1.msra.mxu0 0.0
    %319 = vmatprep.subr.mxu0 0.0
    %320 = vmatpush1.msra.mxu0 0.0
    %321 = vmatprep.subr.mxu0 0.0
    %322 = vmatpush1.msra.mxu0 0.0
    %323 = vmatprep.subr.mxu0 0.0
    %324 = vmatpush1.msra.mxu0 0.0
    %325 = vmatprep.subr.mxu0 0.0
    %326 = vmatpush1.msra.mxu0 0.0
    %327 = vmatprep.subr.mxu0 0.0
    %328 = vmatpush1.msra.mxu0 0.0
    %329 = vmatprep.subr.mxu0 0.0
    %330 = vmatpush1.msra.mxu0 0.0
    %331 = vmatprep.subr.mxu0 0.0
    %332 = vmatpush1.msra.mxu0 0.0
    %333 = vmatprep.subr.mxu0 0.0
    %334 = vmatpush1.msra.mxu0 0.0
    %335 = vmatprep.subr.mxu0 0.0
    %336 = vmatpush1.msra.mxu0 0.0
    %337 = vmatprep.subr.mxu0 0.0
    %338 = vmatpush1.msra.mxu0 0.0
    %339 = vmatprep.subr.mxu0 0.0
    %340 = vmatpush1.msra.mxu0 0.0
    %341 = vmatprep.mubr.f32.mxu0 0.0
    %342 = vmatmul.mubr.f32.gmra.mrb[0].mxu0 %v272
    %v343 = vpop.f32.mrb[0].mxu0
    %v344 = vadd.f32 0.0, %v343
    %v345 = vpop.f32.mrb[0].mxu0
    %346 = vmatprep.mubr.f32.mxu0 0.0
    %347 = vmatmul.mubr.f32.gmra.mrb[0].mxu0 %v275
    %v348 = vpop.f32.mrb[0].mxu0
    %v349 = vadd.f32 0.0, %v348
    %v350 = vpop.f32.mrb[0].mxu0
    %351 = vdwg.mxu0
    %352 = vrot.lane.b32.xlu0 %v142, 120
    %v353 = vpop.permute.xlu0 %352
    %354 = vrot.lane.b32.xlu0 %v147, 120
    %v355 = vpop.permute.xlu0 %354
    %356 = vrot.lane.b32.xlu0 %v142, 88
    %v357 = vpop.permute.xlu0 %356
    %358 = vrot.lane.b32.xlu0 %v147, 88
    %v359 = vpop.permute.xlu0 %358
    %v360 = vsel %vm158, %v353, 0
    %v362 = vsel %vm158, %v355, 0
    %v364 = vsel %vm158, %v357, 0
    %v366 = vsel %vm158, %v359, 0
    %368 = vmatprep.subr.mxu0 0.0
    %369 = vmatpush1.xpose.msra.mxu0 %v364
    %370 = vmatprep.subr.mxu0 0.0
    %371 = vmatpush1.xpose.msra.mxu0 %v366
    %372 = vmatprep.subr.mxu0 0.0
    %373 = vmatpush1.xpose.msra.mxu0 0.0
    %374 = vmatprep.subr.mxu0 0.0
    %375 = vmatpush1.xpose.msra.mxu0 0.0
    %376 = vmatprep.subr.mxu0 0.0
    %377 = vmatpush1.xpose.msra.mxu0 0.0
    %378 = vmatprep.subr.mxu0 0.0
    %379 = vmatpush1.xpose.msra.mxu0 0.0
    %380 = vmatprep.subr.mxu0 0.0
    %381 = vmatpush1.xpose.msra.mxu0 0.0
    %382 = vmatprep.subr.mxu0 0.0
    %383 = vmatpush1.xpose.msra.mxu0 0.0
    %384 = vmatprep.subr.mxu0 0.0
    %385 = vmatpush1.xpose.msra.mxu0 0.0
    %386 = vmatprep.subr.mxu0 0.0
    %387 = vmatpush1.xpose.msra.mxu0 0.0
    %388 = vmatprep.subr.mxu0 0.0
    %389 = vmatpush1.xpose.msra.mxu0 0.0
    %390 = vmatprep.subr.mxu0 0.0
    %391 = vmatpush1.xpose.msra.mxu0 0.0
    %392 = vmatprep.subr.mxu0 0.0
    %393 = vmatpush1.xpose.msra.mxu0 0.0
    %394 = vmatprep.subr.mxu0 0.0
    %395 = vmatpush1.xpose.msra.mxu0 0.0
    %396 = vmatprep.subr.mxu0 0.0
    %397 = vmatpush1.xpose.msra.mxu0 0.0
    %398 = vmatprep.subr.mxu0 0.0
    %399 = vmatpush1.xpose.msra.mxu0 0.0
    %400 = vmatprep.subr.mxu0 0.0
    %401 = vmatpush1.xpose.msra.mxu0 0.0
    %402 = vmatprep.subr.mxu0 0.0
    %403 = vmatpush1.xpose.msra.mxu0 0.0
    %404 = vmatprep.subr.mxu0 0.0
    %405 = vmatpush1.xpose.msra.mxu0 0.0
    %406 = vmatprep.subr.mxu0 0.0
    %407 = vmatpush1.xpose.msra.mxu0 0.0
    %408 = vmatprep.subr.mxu0 0.0
    %409 = vmatpush1.xpose.msra.mxu0 0.0
    %410 = vmatprep.subr.mxu0 0.0
    %411 = vmatpush1.xpose.msra.mxu0 0.0
    %412 = vmatprep.subr.mxu0 0.0
    %413 = vmatpush1.xpose.msra.mxu0 0.0
    %414 = vmatprep.subr.mxu0 0.0
    %415 = vmatpush1.xpose.msra.mxu0 0.0
    %416 = vmatprep.subr.mxu0 0.0
    %417 = vmatpush1.xpose.msra.mxu0 0.0
    %418 = vmatprep.subr.mxu0 0.0
    %419 = vmatpush1.xpose.msra.mxu0 0.0
    %420 = vmatprep.subr.mxu0 0.0
    %421 = vmatpush1.xpose.msra.mxu0 0.0
    %422 = vmatprep.subr.mxu0 0.0
    %423 = vmatpush1.xpose.msra.mxu0 0.0
    %424 = vmatprep.subr.mxu0 0.0
    %425 = vmatpush1.xpose.msra.mxu0 0.0
    %426 = vmatprep.subr.mxu0 0.0
    %427 = vmatpush1.xpose.msra.mxu0 0.0
    %428 = vmatprep.subr.mxu0 0.0
    %429 = vmatpush1.xpose.msra.mxu0 0.0
    %430 = vmatprep.subr.mxu0 0.0
    %431 = vmatpush1.xpose.msra.mxu0 0.0
    %432 = vmatprep.mubr.f32.mxu0 0.0
    %433 = vmatmul.mubr.f32.gmra.mrb[0].mxu0 %v360
    %v434 = vpop.f32.mrb[0].mxu0
    %v435 = vadd.f32 %v150, %v434
    %v436 = vpop.f32.mrb[0].mxu0
    %437 = vmatprep.mubr.f32.mxu0 0.0
    %438 = vmatmul.mubr.f32.gmra.mrb[0].mxu0 %v362
    %v439 = vpop.f32.mrb[0].mxu0
    %v440 = vadd.f32 %v151, %v439
    %v441 = vpop.f32.mrb[0].mxu0
    %442 = vdwg.mxu0
    %v443 = vsel %vm242, %v435, -inf
    %444 = vmax.xlane.f32.xlu0 %v443
    %v445 = vpop.xlane.xlu0 %444
    %v446 = vsel %vm242, %v440, -inf
    %447 = vmax.xlane.f32.xlu0 %v446
    %v448 = vpop.xlane.xlu0 %447
    %v449 = vsub.f32 %v435, %v445
    %v450 = vsub.f32 %v440, %v448
    %v451 = vmul.f32 %v449, 1.442695
    %v452 = vpow.pop %v451
    %v453 = vmul.f32 %v450, 1.442695
    %v454 = vpow.pop %v453
    %v455 = vsel %vm242, %v452, 0.0
    %456 = vadd.xlane.f32.xlu0 %v455
    %v457 = vpop.xlane.xlu0 %456
    %v458 = vsel %vm242, %v454, 0.0
    %459 = vadd.xlane.f32.xlu0 %v458
    %v460 = vpop.xlane.xlu0 %459
    %v461 = vrcp.pop %v457
    %v462 = vmul.f32 %v452, %v461
    %v463 = vrcp.pop %v460
    %v464 = vmul.f32 %v454, %v463
    %465 = vrot.lane.b32.xlu0 %v142, 56
    %v466 = vpop.permute.xlu0 %465
    %467 = vrot.lane.b32.xlu0 %v147, 56
    %v468 = vpop.permute.xlu0 %467
    %v472 = vsel %vm242, %v462, 0
    %v475 = vsel %vm242, %v464, 0
    %477 = vmatprep.subr.mxu0 0.0
    %478 = vmatpush1.msra.mxu0 %v466
    %479 = vmatprep.subr.mxu0 0.0
    %480 = vmatpush1.msra.mxu0 %v468
    %481 = vmatprep.subr.mxu0 0.0
    %482 = vmatpush1.msra.mxu0 0.0
    %483 = vmatprep.subr.mxu0 0.0
    %484 = vmatpush1.msra.mxu0 0.0
    %485 = vmatprep.subr.mxu0 0.0
    %486 = vmatpush1.msra.mxu0 0.0
    %487 = vmatprep.subr.mxu0 0.0
    %488 = vmatpush1.msra.mxu0 0.0
    %489 = vmatprep.subr.mxu0 0.0
    %490 = vmatpush1.msra.mxu0 0.0
    %491 = vmatprep.subr.mxu0 0.0
    %492 = vmatpush1.msra.mxu0 0.0
    %493 = vmatprep.subr.mxu0 0.0
    %494 = vmatpush1.msra.mxu0 0.0
    %495 = vmatprep.subr.mxu0 0.0
    %496 = vmatpush1.msra.mxu0 0.0
    %497 = vmatprep.subr.mxu0 0.0
    %498 = vmatpush1.msra.mxu0 0.0
    %499 = vmatprep.subr.mxu0 0.0
    %500 = vmatpush1.msra.mxu0 0.0
    %501 = vmatprep.subr.mxu0 0.0
    %502 = vmatpush1.msra.mxu0 0.0
    %503 = vmatprep.subr.mxu0 0.0
    %504 = vmatpush1.msra.mxu0 0.0
    %505 = vmatprep.subr.mxu0 0.0
    %506 = vmatpush1.msra.mxu0 0.0
    %507 = vmatprep.subr.mxu0 0.0
    %508 = vmatpush1.msra.mxu0 0.0
    %509 = vmatprep.subr.mxu0 0.0
    %510 = vmatpush1.msra.mxu0 0.0
    %511 = vmatprep.subr.mxu0 0.0
    %512 = vmatpush1.msra.mxu0 0.0
    %513 = vmatprep.subr.mxu0 0.0
    %514 = vmatpush1.msra.mxu0 0.0
    %515 = vmatprep.subr.mxu0 0.0
    %516 = vmatpush1.msra.mxu0 0.0
    %517 = vmatprep.subr.mxu0 0.0
    %518 = vmatpush1.msra.mxu0 0.0
    %519 = vmatprep.subr.mxu0 0.0
    %520 = vmatpush1.msra.mxu0 0.0
    %521 = vmatprep.subr.mxu0 0.0
    %522 = vmatpush1.msra.mxu0 0.0
    %523 = vmatprep.subr.mxu0 0.0
    %524 = vmatpush1.msra.mxu0 0.0
    %525 = vmatprep.subr.mxu0 0.0
    %526 = vmatpush1.msra.mxu0 0.0
    %527 = vmatprep.subr.mxu0 0.0
    %528 = vmatpush1.msra.mxu0 0.0
    %529 = vmatprep.subr.mxu0 0.0
    %530 = vmatpush1.msra.mxu0 0.0
    %531 = vmatprep.subr.mxu0 0.0
    %532 = vmatpush1.msra.mxu0 0.0
    %533 = vmatprep.subr.mxu0 0.0
    %534 = vmatpush1.msra.mxu0 0.0
    %535 = vmatprep.subr.mxu0 0.0
    %536 = vmatpush1.msra.mxu0 0.0
    %537 = vmatprep.subr.mxu0 0.0
    %538 = vmatpush1.msra.mxu0 0.0
    %539 = vmatprep.subr.mxu0 0.0
    %540 = vmatpush1.msra.mxu0 0.0
    %541 = vmatprep.mubr.f32.mxu0 0.0
    %542 = vmatmul.mubr.f32.gmra.mrb[0].mxu0 %v472
    %v543 = vpop.f32.mrb[0].mxu0
    %v544 = vadd.f32 0.0, %v543
    %v545 = vpop.f32.mrb[0].mxu0
    %546 = vmatprep.mubr.f32.mxu0 0.0
    %547 = vmatmul.mubr.f32.gmra.mrb[0].mxu0 %v475
    %v548 = vpop.f32.mrb[0].mxu0
    %v549 = vadd.f32 0.0, %v548
    %v550 = vpop.f32.mrb[0].mxu0
    %551 = vdwg.mxu0
    %552 = vrot.lane.b32.xlu0 %v142, 112
    %v553 = vpop.permute.xlu0 %552
    %554 = vrot.lane.b32.xlu0 %v147, 112
    %v555 = vpop.permute.xlu0 %554
    %556 = vrot.lane.b32.xlu0 %v142, 80
    %v557 = vpop.permute.xlu0 %556
    %558 = vrot.lane.b32.xlu0 %v147, 80
    %v559 = vpop.permute.xlu0 %558
    %v560 = vsel %vm158, %v553, 0
    %v562 = vsel %vm158, %v555, 0
    %v564 = vsel %vm158, %v557, 0
    %v566 = vsel %vm158, %v559, 0
    %568 = vmatprep.subr.mxu0 0.0
    %569 = vmatpush1.xpose.msra.mxu0 %v564
    %570 = vmatprep.subr.mxu0 0.0
    %571 = vmatpush1.xpose.msra.mxu0 %v566
    %572 = vmatprep.subr.mxu0 0.0
    %573 = vmatpush1.xpose.msra.mxu0 0.0
    %574 = vmatprep.subr.mxu0 0.0
    %575 = vmatpush1.xpose.msra.mxu0 0.0
    %576 = vmatprep.subr.mxu0 0.0
    %577 = vmatpush1.xpose.msra.mxu0 0.0
    %578 = vmatprep.subr.mxu0 0.0
    %579 = vmatpush1.xpose.msra.mxu0 0.0
    %580 = vmatprep.subr.mxu0 0.0
    %581 = vmatpush1.xpose.msra.mxu0 0.0
    %582 = vmatprep.subr.mxu0 0.0
    %583 = vmatpush1.xpose.msra.mxu0 0.0
    %584 = vmatprep.subr.mxu0 0.0
    %585 = vmatpush1.xpose.msra.mxu0 0.0
    %586 = vmatprep.subr.mxu0 0.0
    %587 = vmatpush1.xpose.msra.mxu0 0.0
    %588 = vmatprep.subr.mxu0 0.0
    %589 = vmatpush1.xpose.msra.mxu0 0.0
    %590 = vmatprep.subr.mxu0 0.0
    %591 = vmatpush1.xpose.msra.mxu0 0.0
    %592 = vmatprep.subr.mxu0 0.0
    %593 = vmatpush1.xpose.msra.mxu0 0.0
    %594 = vmatprep.subr.mxu0 0.0
    %595 = vmatpush1.xpose.msra.mxu0 0.0
    %596 = vmatprep.subr.mxu0 0.0
    %597 = vmatpush1.xpose.msra.mxu0 0.0
    %598 = vmatprep.subr.mxu0 0.0
    %599 = vmatpush1.xpose.msra.mxu0 0.0
    %600 = vmatprep.subr.mxu0 0.0
    %601 = vmatpush1.xpose.msra.mxu0 0.0
    %602 = vmatprep.subr.mxu0 0.0
    %603 = vmatpush1.xpose.msra.mxu0 0.0
    %604 = vmatprep.subr.mxu0 0.0
    %605 = vmatpush1.xpose.msra.mxu0 0.0
    %606 = vmatprep.subr.mxu0 0.0
    %607 = vmatpush1.xpose.msra.mxu0 0.0
    %608 = vmatprep.subr.mxu0 0.0
    %609 = vmatpush1.xpose.msra.mxu0 0.0
    %610 = vmatprep.subr.mxu0 0.0
    %611 = vmatpush1.xpose.msra.mxu0 0.0
    %612 = vmatprep.subr.mxu0 0.0
    %613 = vmatpush1.xpose.msra.mxu0 0.0
    %614 = vmatprep.subr.mxu0 0.0
    %615 = vmatpush1.xpose.msra.mxu0 0.0
    %616 = vmatprep.subr.mxu0 0.0
    %617 = vmatpush1.xpose.msra.mxu0 0.0
    %618 = vmatprep.subr.mxu0 0.0
    %619 = vmatpush1.xpose.msra.mxu0 0.0
    %620 = vmatprep.subr.mxu0 0.0
    %621 = vmatpush1.xpose.msra.mxu0 0.0
    %622 = vmatprep.subr.mxu0 0.0
    %623 = vmatpush1.xpose.msra.mxu0 0.0
    %624 = vmatprep.subr.mxu0 0.0
    %625 = vmatpush1.xpose.msra.mxu0 0.0
    %626 = vmatprep.subr.mxu0 0.0
    %627 = vmatpush1.xpose.msra.mxu0 0.0
    %628 = vmatprep.subr.mxu0 0.0
    %629 = vmatpush1.xpose.msra.mxu0 0.0
    %630 = vmatprep.subr.mxu0 0.0
    %631 = vmatpush1.xpose.msra.mxu0 0.0
    %632 = vmatprep.mubr.f32.mxu0 0.0
    %633 = vmatmul.mubr.f32.gmra.mrb[0].mxu0 %v560
    %v634 = vpop.f32.mrb[0].mxu0
    %v635 = vadd.f32 %v150, %v634
    %v636 = vpop.f32.mrb[0].mxu0
    %637 = vmatprep.mubr.f32.mxu0 0.0
    %638 = vmatmul.mubr.f32.gmra.mrb[0].mxu0 %v562
    %v639 = vpop.f32.mrb[0].mxu0
    %v640 = vadd.f32 %v151, %v639
    %v641 = vpop.f32.mrb[0].mxu0
    %642 = vdwg.mxu0
    %v643 = vsel %vm242, %v635, -inf
    %644 = vmax.xlane.f32.xlu0 %v643
    %v645 = vpop.xlane.xlu0 %644
    %v646 = vsel %vm242, %v640, -inf
    %647 = vmax.xlane.f32.xlu0 %v646
    %v648 = vpop.xlane.xlu0 %647
    %v649 = vsub.f32 %v635, %v645
    %v650 = vsub.f32 %v640, %v648
    %v651 = vmul.f32 %v649, 1.442695
    %v652 = vpow.pop %v651
    %v653 = vmul.f32 %v650, 1.442695
    %v654 = vpow.pop %v653
    %v655 = vsel %vm242, %v652, 0.0
    %656 = vadd.xlane.f32.xlu0 %v655
    %v657 = vpop.xlane.xlu0 %656
    %v658 = vsel %vm242, %v654, 0.0
    %659 = vadd.xlane.f32.xlu0 %v658
    %v660 = vpop.xlane.xlu0 %659
    %v661 = vrcp.pop %v657
    %v662 = vmul.f32 %v652, %v661
    %v663 = vrcp.pop %v660
    %v664 = vmul.f32 %v654, %v663
    %665 = vrot.lane.b32.xlu0 %v142, 48
    %v666 = vpop.permute.xlu0 %665
    %667 = vrot.lane.b32.xlu0 %v147, 48
    %v668 = vpop.permute.xlu0 %667
    %v672 = vsel %vm242, %v662, 0
    %v675 = vsel %vm242, %v664, 0
    %677 = vmatprep.subr.mxu0 0.0
    %678 = vmatpush1.msra.mxu0 %v666
    %679 = vmatprep.subr.mxu0 0.0
    %680 = vmatpush1.msra.mxu0 %v668
    %681 = vmatprep.subr.mxu0 0.0
    %682 = vmatpush1.msra.mxu0 0.0
    %683 = vmatprep.subr.mxu0 0.0
    %684 = vmatpush1.msra.mxu0 0.0
    %685 = vmatprep.subr.mxu0 0.0
    %686 = vmatpush1.msra.mxu0 0.0
    %687 = vmatprep.subr.mxu0 0.0
    %688 = vmatpush1.msra.mxu0 0.0
    %689 = vmatprep.subr.mxu0 0.0
    %690 = vmatpush1.msra.mxu0 0.0
    %691 = vmatprep.subr.mxu0 0.0
    %692 = vmatpush1.msra.mxu0 0.0
    %693 = vmatprep.subr.mxu0 0.0
    %694 = vmatpush1.msra.mxu0 0.0
    %695 = vmatprep.subr.mxu0 0.0
    %696 = vmatpush1.msra.mxu0 0.0
    %697 = vmatprep.subr.mxu0 0.0
    %698 = vmatpush1.msra.mxu0 0.0
    %699 = vmatprep.subr.mxu0 0.0
    %700 = vmatpush1.msra.mxu0 0.0
    %701 = vmatprep.subr.mxu0 0.0
    %702 = vmatpush1.msra.mxu0 0.0
    %703 = vmatprep.subr.mxu0 0.0
    %704 = vmatpush1.msra.mxu0 0.0
    %705 = vmatprep.subr.mxu0 0.0
    %706 = vmatpush1.msra.mxu0 0.0
    %707 = vmatprep.subr.mxu0 0.0
    %708 = vmatpush1.msra.mxu0 0.0
    %709 = vmatprep.subr.mxu0 0.0
    %710 = vmatpush1.msra.mxu0 0.0
    %711 = vmatprep.subr.mxu0 0.0
    %712 = vmatpush1.msra.mxu0 0.0
    %713 = vmatprep.subr.mxu0 0.0
    %714 = vmatpush1.msra.mxu0 0.0
    %715 = vmatprep.subr.mxu0 0.0
    %716 = vmatpush1.msra.mxu0 0.0
    %717 = vmatprep.subr.mxu0 0.0
    %718 = vmatpush1.msra.mxu0 0.0
    %719 = vmatprep.subr.mxu0 0.0
    %720 = vmatpush1.msra.mxu0 0.0
    %721 = vmatprep.subr.mxu0 0.0
    %722 = vmatpush1.msra.mxu0 0.0
    %723 = vmatprep.subr.mxu0 0.0
    %724 = vmatpush1.msra.mxu0 0.0
    %725 = vmatprep.subr.mxu0 0.0
    %726 = vmatpush1.msra.mxu0 0.0
    %727 = vmatprep.subr.mxu0 0.0
    %728 = vmatpush1.msra.mxu0 0.0
    %729 = vmatprep.subr.mxu0 0.0
    %730 = vmatpush1.msra.mxu0 0.0
    %731 = vmatprep.subr.mxu0 0.0
    %732 = vmatpush1.msra.mxu0 0.0
    %733 = vmatprep.subr.mxu0 0.0
    %734 = vmatpush1.msra.mxu0 0.0
    %735 = vmatprep.subr.mxu0 0.0
    %736 = vmatpush1.msra.mxu0 0.0
    %737 = vmatprep.subr.mxu0 0.0
    %738 = vmatpush1.msra.mxu0 0.0
    %739 = vmatprep.subr.mxu0 0.0
    %740 = vmatpush1.msra.mxu0 0.0
    %741 = vmatprep.mubr.f32.mxu0 0.0
    %742 = vmatmul.mubr.f32.gmra.mrb[0].mxu0 %v672
    %v743 = vpop.f32.mrb[0].mxu0
    %v744 = vadd.f32 0.0, %v743
    %v745 = vpop.f32.mrb[0].mxu0
    %746 = vmatprep.mubr.f32.mxu0 0.0
    %747 = vmatmul.mubr.f32.gmra.mrb[0].mxu0 %v675
    %v748 = vpop.f32.mrb[0].mxu0
    %v749 = vadd.f32 0.0, %v748
    %v750 = vpop.f32.mrb[0].mxu0
    %751 = vdwg.mxu0
    %752 = vrot.lane.b32.xlu0 %v142, 104
    %v753 = vpop.permute.xlu0 %752
    %754 = vrot.lane.b32.xlu0 %v147, 104
    %v755 = vpop.permute.xlu0 %754
    %756 = vrot.lane.b32.xlu0 %v142, 72
    %v757 = vpop.permute.xlu0 %756
    %758 = vrot.lane.b32.xlu0 %v147, 72
    %v759 = vpop.permute.xlu0 %758
    %v760 = vsel %vm158, %v753, 0
    %v762 = vsel %vm158, %v755, 0
    %v764 = vsel %vm158, %v757, 0
    %v766 = vsel %vm158, %v759, 0
    %768 = vmatprep.subr.mxu0 0.0
    %769 = vmatpush1.xpose.msra.mxu0 %v764
    %770 = vmatprep.subr.mxu0 0.0
    %771 = vmatpush1.xpose.msra.mxu0 %v766
    %772 = vmatprep.subr.mxu0 0.0
    %773 = vmatpush1.xpose.msra.mxu0 0.0
    %774 = vmatprep.subr.mxu0 0.0
    %775 = vmatpush1.xpose.msra.mxu0 0.0
    %776 = vmatprep.subr.mxu0 0.0
    %777 = vmatpush1.xpose.msra.mxu0 0.0
    %778 = vmatprep.subr.mxu0 0.0
    %779 = vmatpush1.xpose.msra.mxu0 0.0
    %780 = vmatprep.subr.mxu0 0.0
    %781 = vmatpush1.xpose.msra.mxu0 0.0
    %782 = vmatprep.subr.mxu0 0.0
    %783 = vmatpush1.xpose.msra.mxu0 0.0
    %784 = vmatprep.subr.mxu0 0.0
    %785 = vmatpush1.xpose.msra.mxu0 0.0
    %786 = vmatprep.subr.mxu0 0.0
    %787 = vmatpush1.xpose.msra.mxu0 0.0
    %788 = vmatprep.subr.mxu0 0.0
    %789 = vmatpush1.xpose.msra.mxu0 0.0
    %790 = vmatprep.subr.mxu0 0.0
    %791 = vmatpush1.xpose.msra.mxu0 0.0
    %792 = vmatprep.subr.mxu0 0.0
    %793 = vmatpush1.xpose.msra.mxu0 0.0
    %794 = vmatprep.subr.mxu0 0.0
    %795 = vmatpush1.xpose.msra.mxu0 0.0
    %796 = vmatprep.subr.mxu0 0.0
    %797 = vmatpush1.xpose.msra.mxu0 0.0
    %798 = vmatprep.subr.mxu0 0.0
    %799 = vmatpush1.xpose.msra.mxu0 0.0
    %800 = vmatprep.subr.mxu0 0.0
    %801 = vmatpush1.xpose.msra.mxu0 0.0
    %802 = vmatprep.subr.mxu0 0.0
    %803 = vmatpush1.xpose.msra.mxu0 0.0
    %804 = vmatprep.subr.mxu0 0.0
    %805 = vmatpush1.xpose.msra.mxu0 0.0
    %806 = vmatprep.subr.mxu0 0.0
    %807 = vmatpush1.xpose.msra.mxu0 0.0
    %808 = vmatprep.subr.mxu0 0.0
    %809 = vmatpush1.xpose.msra.mxu0 0.0
    %810 = vmatprep.subr.mxu0 0.0
    %811 = vmatpush1.xpose.msra.mxu0 0.0
    %812 = vmatprep.subr.mxu0 0.0
    %813 = vmatpush1.xpose.msra.mxu0 0.0
    %814 = vmatprep.subr.mxu0 0.0
    %815 = vmatpush1.xpose.msra.mxu0 0.0
    %816 = vmatprep.subr.mxu0 0.0
    %817 = vmatpush1.xpose.msra.mxu0 0.0
    %818 = vmatprep.subr.mxu0 0.0
    %819 = vmatpush1.xpose.msra.mxu0 0.0
    %820 = vmatprep.subr.mxu0 0.0
    %821 = vmatpush1.xpose.msra.mxu0 0.0
    %822 = vmatprep.subr.mxu0 0.0
    %823 = vmatpush1.xpose.msra.mxu0 0.0
    %824 = vmatprep.subr.mxu0 0.0
    %825 = vmatpush1.xpose.msra.mxu0 0.0
    %826 = vmatprep.subr.mxu0 0.0
    %827 = vmatpush1.xpose.msra.mxu0 0.0
    %828 = vmatprep.subr.mxu0 0.0
    %829 = vmatpush1.xpose.msra.mxu0 0.0
    %830 = vmatprep.subr.mxu0 0.0
    %831 = vmatpush1.xpose.msra.mxu0 0.0
    %832 = vmatprep.mubr.f32.mxu0 0.0
    %833 = vmatmul.mubr.f32.gmra.mrb[0].mxu0 %v760
    %v834 = vpop.f32.mrb[0].mxu0
    %v835 = vadd.f32 %v150, %v834
    %v836 = vpop.f32.mrb[0].mxu0
    %837 = vmatprep.mubr.f32.mxu0 0.0
    %838 = vmatmul.mubr.f32.gmra.mrb[0].mxu0 %v762
    %v839 = vpop.f32.mrb[0].mxu0
    %v840 = vadd.f32 %v151, %v839
    %v841 = vpop.f32.mrb[0].mxu0
    %842 = vdwg.mxu0
    %v843 = vsel %vm242, %v835, -inf
    %844 = vmax.xlane.f32.xlu0 %v843
    %v845 = vpop.xlane.xlu0 %844
    %v846 = vsel %vm242, %v840, -inf
    %847 = vmax.xlane.f32.xlu0 %v846
    %v848 = vpop.xlane.xlu0 %847
    %v849 = vsub.f32 %v835, %v845
    %v850 = vsub.f32 %v840, %v848
    %v851 = vmul.f32 %v849, 1.442695
    %v852 = vpow.pop %v851
    %v853 = vmul.f32 %v850, 1.442695
    %v854 = vpow.pop %v853
    %v855 = vsel %vm242, %v852, 0.0
    %856 = vadd.xlane.f32.xlu0 %v855
    %v857 = vpop.xlane.xlu0 %856
    %v858 = vsel %vm242, %v854, 0.0
    %859 = vadd.xlane.f32.xlu0 %v858
    %v860 = vpop.xlane.xlu0 %859
    %v861 = vrcp.pop %v857
    %v862 = vmul.f32 %v852, %v861
    %v863 = vrcp.pop %v860
    %v864 = vmul.f32 %v854, %v863
    %865 = vrot.lane.b32.xlu0 %v142, 40
    %v866 = vpop.permute.xlu0 %865
    %867 = vrot.lane.b32.xlu0 %v147, 40
    %v868 = vpop.permute.xlu0 %867
    %v872 = vsel %vm242, %v862, 0
    %v875 = vsel %vm242, %v864, 0
    %877 = vmatprep.subr.mxu0 0.0
    %878 = vmatpush1.msra.mxu0 %v866
    %879 = vmatprep.subr.mxu0 0.0
    %880 = vmatpush1.msra.mxu0 %v868
    %881 = vmatprep.subr.mxu0 0.0
    %882 = vmatpush1.msra.mxu0 0.0
    %883 = vmatprep.subr.mxu0 0.0
    %884 = vmatpush1.msra.mxu0 0.0
    %885 = vmatprep.subr.mxu0 0.0
    %886 = vmatpush1.msra.mxu0 0.0
    %887 = vmatprep.subr.mxu0 0.0
    %888 = vmatpush1.msra.mxu0 0.0
    %889 = vmatprep.subr.mxu0 0.0
    %890 = vmatpush1.msra.mxu0 0.0
    %891 = vmatprep.subr.mxu0 0.0
    %892 = vmatpush1.msra.mxu0 0.0
    %893 = vmatprep.subr.mxu0 0.0
    %894 = vmatpush1.msra.mxu0 0.0
    %895 = vmatprep.subr.mxu0 0.0
    %896 = vmatpush1.msra.mxu0 0.0
    %897 = vmatprep.subr.mxu0 0.0
    %898 = vmatpush1.msra.mxu0 0.0
    %899 = vmatprep.subr.mxu0 0.0
    %900 = vmatpush1.msra.mxu0 0.0
    %901 = vmatprep.subr.mxu0 0.0
    %902 = vmatpush1.msra.mxu0 0.0
    %903 = vmatprep.subr.mxu0 0.0
    %904 = vmatpush1.msra.mxu0 0.0
    %905 = vmatprep.subr.mxu0 0.0
    %906 = vmatpush1.msra.mxu0 0.0
    %907 = vmatprep.subr.mxu0 0.0
    %908 = vmatpush1.msra.mxu0 0.0
    %909 = vmatprep.subr.mxu0 0.0
    %910 = vmatpush1.msra.mxu0 0.0
    %911 = vmatprep.subr.mxu0 0.0
    %912 = vmatpush1.msra.mxu0 0.0
    %913 = vmatprep.subr.mxu0 0.0
    %914 = vmatpush1.msra.mxu0 0.0
    %915 = vmatprep.subr.mxu0 0.0
    %916 = vmatpush1.msra.mxu0 0.0
    %917 = vmatprep.subr.mxu0 0.0
    %918 = vmatpush1.msra.mxu0 0.0
    %919 = vmatprep.subr.mxu0 0.0
    %920 = vmatpush1.msra.mxu0 0.0
    %921 = vmatprep.subr.mxu0 0.0
    %922 = vmatpush1.msra.mxu0 0.0
    %923 = vmatprep.subr.mxu0 0.0
    %924 = vmatpush1.msra.mxu0 0.0
    %925 = vmatprep.subr.mxu0 0.0
    %926 = vmatpush1.msra.mxu0 0.0
    %927 = vmatprep.subr.mxu0 0.0
    %928 = vmatpush1.msra.mxu0 0.0
    %929 = vmatprep.subr.mxu0 0.0
    %930 = vmatpush1.msra.mxu0 0.0
    %931 = vmatprep.subr.mxu0 0.0
    %932 = vmatpush1.msra.mxu0 0.0
    %933 = vmatprep.subr.mxu0 0.0
    %934 = vmatpush1.msra.mxu0 0.0
    %935 = vmatprep.subr.mxu0 0.0
    %936 = vmatpush1.msra.mxu0 0.0
    %937 = vmatprep.subr.mxu0 0.0
    %938 = vmatpush1.msra.mxu0 0.0
    %939 = vmatprep.subr.mxu0 0.0
    %940 = vmatpush1.msra.mxu0 0.0
    %941 = vmatprep.mubr.f32.mxu0 0.0
    %942 = vmatmul.mubr.f32.gmra.mrb[0].mxu0 %v872
    %v943 = vpop.f32.mrb[0].mxu0
    %v944 = vadd.f32 0.0, %v943
    %v945 = vpop.f32.mrb[0].mxu0
    %946 = vmatprep.mubr.f32.mxu0 0.0
    %947 = vmatmul.mubr.f32.gmra.mrb[0].mxu0 %v875
    %v948 = vpop.f32.mrb[0].mxu0
    %v949 = vadd.f32 0.0, %v948
    %v950 = vpop.f32.mrb[0].mxu0
    %951 = vdwg.mxu0
    %954 = vrot.lane.b32.xlu0 %v544, 8
    %v955 = vpop.permute.xlu0 %954
    %956 = vrot.lane.b32.xlu0 %v549, 8
    %v957 = vpop.permute.xlu0 %956
    %962 = vrot.lane.b32.xlu0 %v744, 16
    %v963 = vpop.permute.xlu0 %962
    %964 = vrot.lane.b32.xlu0 %v749, 16
    %v965 = vpop.permute.xlu0 %964
    %970 = vrot.lane.b32.xlu0 %v944, 24
    %v971 = vpop.permute.xlu0 %970
    %972 = vrot.lane.b32.xlu0 %v949, 24
    %v973 = vpop.permute.xlu0 %972
    %v976 = vsel %vm158, %v344, %v955
    %v977 = vsel %vm158, %v349, %v957
    %v978 = vsel %vm242, %v976, %v963
    %v979 = vsel %vm242, %v977, %v965
    %vm980 = vcmask 195584
    %v981 = vsel %vm980, %v978, %v971
    %v982 = vsel %vm980, %v979, %v973
    %v983 = vld [vmem:[%s2] sm:$0xff]
    %v984 = vld [vmem:[%s2 + $0x8] sm:$0xff]
    %v985 = vld [vmem:[%s2 + $0x10] sm:$0xff]
    %v986 = vld [vmem:[%s2 + $0x18] sm:$0xff]
    %v988 = vsel %vm33, %v981, 0
    %v991 = vsel %vm33, %v982, 0
    %993 = vmatprep.subr.mxu0 0.0
    %994 = vmatpush1.msra.mxu0 %v983
    %995 = vmatprep.subr.mxu0 0.0
    %996 = vmatpush1.msra.mxu0 %v984
    %997 = vmatprep.subr.mxu0 0.0
    %998 = vmatpush1.msra.mxu0 %v985
    %999 = vmatprep.subr.mxu0 0.0
    %1000 = vmatpush1.msra.mxu0 %v986
    %1001 = vmatprep.subr.mxu0 0.0
    %1002 = vmatpush1.msra.mxu0 0.0
    %1003 = vmatprep.subr.mxu0 0.0
    %1004 = vmatpush1.msra.mxu0 0.0
    %1005 = vmatprep.subr.mxu0 0.0
    %1006 = vmatpush1.msra.mxu0 0.0
    %1007 = vmatprep.subr.mxu0 0.0
    %1008 = vmatpush1.msra.mxu0 0.0
    %1009 = vmatprep.subr.mxu0 0.0
    %1010 = vmatpush1.msra.mxu0 0.0
    %1011 = vmatprep.subr.mxu0 0.0
    %1012 = vmatpush1.msra.mxu0 0.0
    %1013 = vmatprep.subr.mxu0 0.0
    %1014 = vmatpush1.msra.mxu0 0.0
    %1015 = vmatprep.subr.mxu0 0.0
    %1016 = vmatpush1.msra.mxu0 0.0
    %1017 = vmatprep.subr.mxu0 0.0
    %1018 = vmatpush1.msra.mxu0 0.0
    %1019 = vmatprep.subr.mxu0 0.0
    %1020 = vmatpush1.msra.mxu0 0.0
    %1021 = vmatprep.subr.mxu0 0.0
    %1022 = vmatpush1.msra.mxu0 0.0
    %1023 = vmatprep.subr.mxu0 0.0
    %1024 = vmatpush1.msra.mxu0 0.0
    %1025 = vmatprep.subr.mxu0 0.0
    %1026 = vmatpush1.msra.mxu0 0.0
    %1027 = vmatprep.subr.mxu0 0.0
    %1028 = vmatpush1.msra.mxu0 0.0
    %1029 = vmatprep.subr.mxu0 0.0
    %1030 = vmatpush1.msra.mxu0 0.0
    %1031 = vmatprep.subr.mxu0 0.0
    %1032 = vmatpush1.msra.mxu0 0.0
    %1033 = vmatprep.subr.mxu0 0.0
    %1034 = vmatpush1.msra.mxu0 0.0
    %1035 = vmatprep.subr.mxu0 0.0
    %1036 = vmatpush1.msra.mxu0 0.0
    %1037 = vmatprep.subr.mxu0 0.0
    %1038 = vmatpush1.msra.mxu0 0.0
    %1039 = vmatprep.subr.mxu0 0.0
    %1040 = vmatpush1.msra.mxu0 0.0
    %1041 = vmatprep.subr.mxu0 0.0
    %1042 = vmatpush1.msra.mxu0 0.0
    %1043 = vmatprep.subr.mxu0 0.0
    %1044 = vmatpush1.msra.mxu0 0.0
    %1045 = vmatprep.subr.mxu0 0.0
    %1046 = vmatpush1.msra.mxu0 0.0
    %1047 = vmatprep.subr.mxu0 0.0
    %1048 = vmatpush1.msra.mxu0 0.0
    %1049 = vmatprep.subr.mxu0 0.0
    %1050 = vmatpush1.msra.mxu0 0.0
    %1051 = vmatprep.subr.mxu0 0.0
    %1052 = vmatpush1.msra.mxu0 0.0
    %1053 = vmatprep.subr.mxu0 0.0
    %1054 = vmatpush1.msra.mxu0 0.0
    %1055 = vmatprep.subr.mxu0 0.0
    %1056 = vmatpush1.msra.mxu0 0.0
    %1057 = vmatprep.mubr.f32.mxu0 0.0
    %1058 = vmatmul.mubr.f32.gmra.mrb[0].mxu0 %v988
    %v1059 = vpop.f32.mrb[0].mxu0
    %v1060 = vadd.f32 0.0, %v1059
    %v1061 = vpop.f32.mrb[0].mxu0
    %1062 = vmatprep.mubr.f32.mxu0 0.0
    %1063 = vmatmul.mubr.f32.gmra.mrb[0].mxu0 %v991
    %v1064 = vpop.f32.mrb[0].mxu0
    %v1065 = vadd.f32 0.0, %v1064
    %v1066 = vpop.f32.mrb[0].mxu0
    %1067 = vdwg.mxu0
    %v1068 = vadd.f32 %v27, %v1060
    %v1069 = vadd.f32 %v28, %v1065
    %v1070 = vlaneseq
    %v1071 = vshrl.u32 %v1070, 7
    %v1072 = vsub.s32 0, %v1071
    %v1073 = vrot.slane %v31, %v1072
    %v1074 = vadd.f32 %v1068, %v1073
    %v1075 = vadd.f32 %v1069, %v1073
    %v1076 = vsel %vm33, %v1074, 0.0
    %1077 = vadd.xlane.f32.xlu0 %v1076
    %v1078 = vpop.xlane.xlu0 %1077
    %v1079 = vsel %vm33, %v1075, 0.0
    %1080 = vadd.xlane.f32.xlu0 %v1079
    %v1081 = vpop.xlane.xlu0 %1080
    %v1082 = vmul.f32 %v1078, %v40
    %v1083 = vmul.f32 %v1081, %v40
    %v1084 = vsub.f32 %v1074, %v1082
    %v1085 = vsub.f32 %v1075, %v1083
    %v1086 = vmul.f32 %v1084, %v1084
    %v1087 = vmul.f32 %v1085, %v1085
    %v1088 = vsel %vm33, %v1086, 0.0
    %1089 = vadd.xlane.f32.xlu0 %v1088
    %v1090 = vpop.xlane.xlu0 %1089
    %v1091 = vsel %vm33, %v1087, 0.0
    %1092 = vadd.xlane.f32.xlu0 %v1091
    %v1093 = vpop.xlane.xlu0 %1092
    %v1094 = vmul.f32 %v1090, %v40
    %v1095 = vmul.f32 %v1093, %v40
    %v1096 = vadd.f32 %v1094, 1e-05
    %v1097 = vadd.f32 %v1095, 1e-05
    %v1098 = vrsqrt.pop %v1096
    %v1099 = vrsqrt.pop %v1097
    %v1100 = vmul.f32 %v1084, %v1098
    %v1101 = vmul.f32 %v1085, %v1099
    %v1102 = vld [vmem:[%s3] sm:$0xff]
    %v1103 = vld [vmem:[%s3 + $0x8] sm:$0xff]
    %v1104 = vld [vmem:[%s3 + $0x10] sm:$0xff]
    %v1105 = vld [vmem:[%s3 + $0x18] sm:$0xff]
    %v1106 = vlaneseq
    %v1107 = vshrl.u32 %v1106, 7
    %v1108 = vsub.s32 0, %v1107
    %v1109 = vrot.slane %v30, %v1108
    %v1111 = vsel %vm33, %v1100, 0
    %v1114 = vsel %vm33, %v1101, 0
    %1116 = vmatprep.subr.mxu0 0.0
    %1117 = vmatpush1.msra.mxu0 %v1102
    %1118 = vmatprep.subr.mxu0 0.0
    %1119 = vmatpush1.msra.mxu0 %v1103
    %1120 = vmatprep.subr.mxu0 0.0
    %1121 = vmatpush1.msra.mxu0 %v1104
    %1122 = vmatprep.subr.mxu0 0.0
    %1123 = vmatpush1.msra.mxu0 %v1105
    %1124 = vmatprep.subr.mxu0 0.0
    %1125 = vmatpush1.msra.mxu0 0.0
    %1126 = vmatprep.subr.mxu0 0.0
    %1127 = vmatpush1.msra.mxu0 0.0
    %1128 = vmatprep.subr.mxu0 0.0
    %1129 = vmatpush1.msra.mxu0 0.0
    %1130 = vmatprep.subr.mxu0 0.0
    %1131 = vmatpush1.msra.mxu0 0.0
    %1132 = vmatprep.subr.mxu0 0.0
    %1133 = vmatpush1.msra.mxu0 0.0
    %1134 = vmatprep.subr.mxu0 0.0
    %1135 = vmatpush1.msra.mxu0 0.0
    %1136 = vmatprep.subr.mxu0 0.0
    %1137 = vmatpush1.msra.mxu0 0.0
    %1138 = vmatprep.subr.mxu0 0.0
    %1139 = vmatpush1.msra.mxu0 0.0
    %1140 = vmatprep.subr.mxu0 0.0
    %1141 = vmatpush1.msra.mxu0 0.0
    %1142 = vmatprep.subr.mxu0 0.0
    %1143 = vmatpush1.msra.mxu0 0.0
    %1144 = vmatprep.subr.mxu0 0.0
    %1145 = vmatpush1.msra.mxu0 0.0
    %1146 = vmatprep.subr.mxu0 0.0
    %1147 = vmatpush1.msra.mxu0 0.0
    %1148 = vmatprep.subr.mxu0 0.0
    %1149 = vmatpush1.msra.mxu0 0.0
    %1150 = vmatprep.subr.mxu0 0.0
    %1151 = vmatpush1.msra.mxu0 0.0
    %1152 = vmatprep.subr.mxu0 0.0
    %1153 = vmatpush1.msra.mxu0 0.0
    %1154 = vmatprep.subr.mxu0 0.0
    %1155 = vmatpush1.msra.mxu0 0.0
    %1156 = vmatprep.subr.mxu0 0.0
    %1157 = vmatpush1.msra.mxu0 0.0
    %1158 = vmatprep.subr.mxu0 0.0
    %1159 = vmatpush1.msra.mxu0 0.0
    %1160 = vmatprep.subr.mxu0 0.0
    %1161 = vmatpush1.msra.mxu0 0.0
    %1162 = vmatprep.subr.mxu0 0.0
    %1163 = vmatpush1.msra.mxu0 0.0
    %1164 = vmatprep.subr.mxu0 0.0
    %1165 = vmatpush1.msra.mxu0 0.0
    %1166 = vmatprep.subr.mxu0 0.0
    %1167 = vmatpush1.msra.mxu0 0.0
    %1168 = vmatprep.subr.mxu0 0.0
    %1169 = vmatpush1.msra.mxu0 0.0
    %1170 = vmatprep.subr.mxu0 0.0
    %1171 = vmatpush1.msra.mxu0 0.0
    %1172 = vmatprep.subr.mxu0 0.0
    %1173 = vmatpush1.msra.mxu0 0.0
    %1174 = vmatprep.subr.mxu0 0.0
    %1175 = vmatpush1.msra.mxu0 0.0
    %1176 = vmatprep.subr.mxu0 0.0
    %1177 = vmatpush1.msra.mxu0 0.0
    %1178 = vmatprep.subr.mxu0 0.0
    %1179 = vmatpush1.msra.mxu0 0.0
    %1180 = vmatprep.mubr.f32.mxu0 0.0
    %1181 = vmatmul.mubr.f32.gmra.mrb[0].mxu0 %v1111
    %v1182 = vpop.f32.mrb[0].mxu0
    %v1183 = vadd.f32 %v1109, %v1182
    %v1184 = vpop.f32.mrb[0].mxu0
    %1185 = vmatprep.mubr.f32.mxu0 0.0
    %1186 = vmatmul.mubr.f32.gmra.mrb[0].mxu0 %v1114
    %v1187 = vpop.f32.mrb[0].mxu0
    %v1188 = vadd.f32 %v1109, %v1187
    %v1189 = vpop.f32.mrb[0].mxu0
    %1190 = vdwg.mxu0
    %v1191 = vmul.f32 %v1183, 0.5
    %v1192 = vmul.f32 %v1188, 0.5
    %v1193 = vmul.f32 %v1183, 0.044715
    %v1194 = vmul.f32 %v1188, 0.044715
    %v1195 = vmul.f32 %v1193, %v1183
    %v1196 = vmul.f32 %v1194, %v1188
    %v1197 = vmul.f32 %v1195, %v1183
    %v1198 = vmul.f32 %v1196, %v1188
    %v1199 = vadd.f32 %v1183, %v1197
    %v1200 = vadd.f32 %v1188, %v1198
    %v1201 = vmul.f32 %v1199, 0.7978846
    %v1202 = vmul.f32 %v1200, 0.7978846
    %v1203 = vtanh.pop %v1201
    %v1204 = vtanh.pop %v1202
    %v1205 = vadd.f32 %v1203, 1.0
    %v1206 = vadd.f32 %v1204, 1.0
    %v1207 = vmul.f32 %v1191, %v1205
    %v1208 = vmul.f32 %v1192, %v1206
    %v1209 = vld [vmem:[%s4] sm:$0xff]
    %v1210 = vld [vmem:[%s4 + $0x8] sm:$0xff]
    %v1211 = vld [vmem:[%s4 + $0x10] sm:$0xff]
    %v1212 = vld [vmem:[%s4 + $0x18] sm:$0xff]
    %v1213 = vld [vmem:[%s4 + $0x20] sm:$0xff]
    %v1214 = vld [vmem:[%s4 + $0x28] sm:$0xff]
    %v1215 = vld [vmem:[%s4 + $0x30] sm:$0xff]
    %v1216 = vld [vmem:[%s4 + $0x38] sm:$0xff]
    %v1217 = vld [vmem:[%s4 + $0x40] sm:$0xff]
    %v1218 = vld [vmem:[%s4 + $0x48] sm:$0xff]
    %v1219 = vld [vmem:[%s4 + $0x50] sm:$0xff]
    %v1220 = vld [vmem:[%s4 + $0x58] sm:$0xff]
    %v1221 = vld [vmem:[%s4 + $0x60] sm:$0xff]
    %v1222 = vld [vmem:[%s4 + $0x68] sm:$0xff]
    %v1223 = vld [vmem:[%s4 + $0x70] sm:$0xff]
    %v1224 = vld [vmem:[%s4 + $0x78] sm:$0xff]
    %1225 = vmatprep.subr.mxu0 0.0
    %1226 = vmatpush1.msra.mxu0 %v1209
    %1227 = vmatprep.subr.mxu0 0.0
    %1228 = vmatpush1.msra.mxu0 %v1210
    %1229 = vmatprep.subr.mxu0 0.0
    %1230 = vmatpush1.msra.mxu0 %v1211
    %1231 = vmatprep.subr.mxu0 0.0
    %1232 = vmatpush1.msra.mxu0 %v1212
    %1233 = vmatprep.subr.mxu0 0.0
    %1234 = vmatpush1.msra.mxu0 %v1213
    %1235 = vmatprep.subr.mxu0 0.0
    %1236 = vmatpush1.msra.mxu0 %v1214
    %1237 = vmatprep.subr.mxu0 0.0
    %1238 = vmatpush1.msra.mxu0 %v1215
    %1239 = vmatprep.subr.mxu0 0.0
    %1240 = vmatpush1.msra.mxu0 %v1216
    %1241 = vmatprep.subr.mxu0 0.0
    %1242 = vmatpush1.msra.mxu0 %v1217
    %1243 = vmatprep.subr.mxu0 0.0
    %1244 = vmatpush1.msra.mxu0 %v1218
    %1245 = vmatprep.subr.mxu0 0.0
    %1246 = vmatpush1.msra.mxu0 %v1219
    %1247 = vmatprep.subr.mxu0 0.0
    %1248 = vmatpush1.msra.mxu0 %v1220
    %1249 = vmatprep.subr.mxu0 0.0
    %1250 = vmatpush1.msra.mxu0 %v1221
    %1251 = vmatprep.subr.mxu0 0.0
    %1252 = vmatpush1.msra.mxu0 %v1222
    %1253 = vmatprep.subr.mxu0 0.0
    %1254 = vmatpush1.msra.mxu0 %v1223
    %1255 = vmatprep.subr.mxu0 0.0
    %1256 = vmatpush1.msra.mxu0 %v1224
    %1257 = vmatprep.subr.mxu0 0.0
    %1258 = vmatpush1.msra.mxu0 0.0
    %1259 = vmatprep.subr.mxu0 0.0
    %1260 = vmatpush1.msra.mxu0 0.0
    %1261 = vmatprep.subr.mxu0 0.0
    %1262 = vmatpush1.msra.mxu0 0.0
    %1263 = vmatprep.subr.mxu0 0.0
    %1264 = vmatpush1.msra.mxu0 0.0
    %1265 = vmatprep.subr.mxu0 0.0
    %1266 = vmatpush1.msra.mxu0 0.0
    %1267 = vmatprep.subr.mxu0 0.0
    %1268 = vmatpush1.msra.mxu0 0.0
    %1269 = vmatprep.subr.mxu0 0.0
    %1270 = vmatpush1.msra.mxu0 0.0
    %1271 = vmatprep.subr.mxu0 0.0
    %1272 = vmatpush1.msra.mxu0 0.0
    %1273 = vmatprep.subr.mxu0 0.0
    %1274 = vmatpush1.msra.mxu0 0.0
    %1275 = vmatprep.subr.mxu0 0.0
    %1276 = vmatpush1.msra.mxu0 0.0
    %1277 = vmatprep.subr.mxu0 0.0
    %1278 = vmatpush1.msra.mxu0 0.0
    %1279 = vmatprep.subr.mxu0 0.0
    %1280 = vmatpush1.msra.mxu0 0.0
    %1281 = vmatprep.subr.mxu0 0.0
    %1282 = vmatpush1.msra.mxu0 0.0
    %1283 = vmatprep.subr.mxu0 0.0
    %1284 = vmatpush1.msra.mxu0 0.0
    %1285 = vmatprep.subr.mxu0 0.0
    %1286 = vmatpush1.msra.mxu0 0.0
    %1287 = vmatprep.subr.mxu0 0.0
    %1288 = vmatpush1.msra.mxu0 0.0
    %1289 = vmatprep.mubr.f32.mxu0 0.0
    %1290 = vmatmul.mubr.f32.gmra.mrb[0].mxu0 %v1207
    %v1291 = vpop.f32.mrb[0].mxu0
    %v1292 = vadd.f32 0.0, %v1291
    %v1293 = vpop.f32.mrb[0].mxu0
    %1294 = vmatprep.mubr.f32.mxu0 0.0
    %1295 = vmatmul.mubr.f32.gmra.mrb[0].mxu0 %v1208
    %v1296 = vpop.f32.mrb[0].mxu0
    %v1297 = vadd.f32 0.0, %v1296
    %v1298 = vpop.f32.mrb[0].mxu0
    %1299 = vdwg.mxu0
    %v1300 = vadd.f32 %v1074, %v1292
    %v1301 = vadd.f32 %v1075, %v1297
    %v1302 = vlaneseq
    %v1303 = vshrl.u32 %v1302, 7
    %v1304 = vsub.s32 0, %v1303
    %v1305 = vrot.slane %v32, %v1304
    %v1306 = vadd.f32 %v1300, %v1305
    %v1307 = vadd.f32 %v1301, %v1305
    %1308 = vst.msk [vmem:[#allocation2] sm:$0xff] %vm33, %v1306
    %1309 = vst.msk [vmem:[#allocation2 + $0x8] sm:$0xff] %vm33, %v1307
    // Predicated region
    $region30: #{tpu_custom_call.1} parent=1 // pred_check
      _
    $region31: #{tpu_custom_call.1} parent=1 // pred_check_branch
      %1311 = sbr.rel (0) target = $region33
    $region32: #{tpu_custom_call.1} parent=1 // pred_region
      %s1313 = ssub.s32 256, 256
      %1314 = vsyncadd [#allocation3], %s1313
      %s1315 = sshll.u32 [#allocation2], 4
      %s1316 = int_to_ptr.vmem [resolvable:$true] %s1315
      %1321 = dma.vmem_to_hbm [thread:$0]  %s1316, 256, %s7, [#allocation3], 128, 128, 8
    $region33: #{tpu_custom_call.1} parent=1 // pred_fallthru
      _
    // Predicated region
    $region34: #{tpu_custom_call.1} parent=1 // pred_check
      _
    $region35: #{tpu_custom_call.1} parent=1 // pred_check_branch
      %1323 = sbr.rel (0) target = $region37
    $region36: #{tpu_custom_call.1} parent=1 // pred_region
      %1324 = dma.done [#allocation3], 256
    $region37: #{tpu_custom_call.1} parent=1 // pred_fallthru
      _
    %1325 = vsyncpa [#allocation3], 1

</llo_original>
